<compile_context>
chip_gen: v7x
topology: tpu7x:2x2x1
jax: 0.10.0
libtpu: 0.0.40
codegen_flags: <defaults>
</compile_context>

<pallas_src>
import functools

import jax
import jax.numpy as jnp
from jax import lax
from jax.experimental import pallas as pl
from jax.experimental.pallas import tpu as pltpu


def _elu(y):
    # ELU(alpha=1): y if y > 0 else exp(y) - 1.  exp(min(y,0)) keeps the
    # untaken branch finite; exp goes to the EUP slot on TPU.
    return jnp.where(y > 0, y, jnp.exp(jnp.minimum(y, 0.0)) - 1.0)


def _unet_block_kernel(x_ref, w1_ref, b1_ref, w2_ref, b2_ref, mask_ref, o_ref,
                       *, img_w):
    # x_ref:    (1, Cin,  HW)      f32   one image, flattened spatial on lanes
    # w1_ref:   (3, 3, Cout, Cin)  bf16  BN1 scale folded into weights
    # b1_ref:   (Cout, 1)          f32   folded BN1 shift
    # w2_ref:   (3, 3, Cout, Cout) bf16  BN2 scale folded into weights
    # b2_ref:   (Cout, 1)          f32   folded BN2 shift
    # mask_ref: (3, 3, 1, HW)      f32   {0,1} validity masks per tap (halo)
    # o_ref:    (1, Cout, HW)
    _, _, hw = x_ref.shape
    cout = o_ref.shape[1]

    def conv3x3_bn_elu(x, w_ref, b_ref):
        # x: (C_in, HW) f32 -> (Cout, HW) f32 after conv + BN(eval) + ELU.
        acc = jnp.zeros((cout, hw), jnp.float32)
        for dy in range(3):
            for dx in range(3):
                off = (dy - 1) * img_w + (dx - 1)
                if off == 0:
                    tap = x                       # center tap: no shift/mask
                else:
                    # Lane p now holds input pixel p+off (static lane roll);
                    # taps that fall outside the image (or wrap across a row)
                    # are zeroed by the precomputed mask == zero padding.
                    tap = jnp.roll(x, -off, axis=1) * mask_ref[dy, dx]
                acc += jnp.dot(w_ref[dy, dx], tap.astype(jnp.bfloat16),
                               preferred_element_type=jnp.float32)
        # Folded BatchNorm shift (scale already in the weights) + ELU.
        # Dropout (eval mode) is the identity.
        return _elu(acc + b_ref[...])

    h = conv3x3_bn_elu(x_ref[0], w1_ref, b1_ref)   # stage 1 (stays on-chip)
    y = conv3x3_bn_elu(h, w2_ref, b2_ref)          # stage 2 (fused)
    o_ref[0] = y.astype(o_ref.dtype)


def _border_masks(h, w):
    """(3,3,1,h*w) f32 {0,1} masks: 1 where the tap's input pixel is in-image."""
    yy = jnp.arange(h, dtype=jnp.int32)[:, None]
    xx = jnp.arange(w, dtype=jnp.int32)[None, :]
    rows = []
    for dy in range(3):
        row = []
        for dx in range(3):
            valid = ((yy + dy - 1 >= 0) & (yy + dy - 1 < h) &
                     (xx + dx - 1 >= 0) & (xx + dx - 1 < w))
            row.append(valid.reshape(1, h * w).astype(jnp.float32))
        rows.append(jnp.stack(row))
    return jnp.stack(rows)


def unet2d_block(x_nchw, params):
    """Full UNet2DBlock forward (eval mode). Input/output in PyTorch NCHW."""
    n, cin, h, w = x_nchw.shape
    cout = params["w1"].shape[0]
    hw = h * w

    # Fold BN scale into the conv weights (host-side, free); keep only shift.
    # PyTorch OIHW (Cout,Cin,3,3) -> kernel layout (3,3,Cout,Cin), bf16.
    def prep_w(w_oihw, scale):
        wf = w_oihw * scale[:, None, None, None]
        return jnp.transpose(wf, (2, 3, 0, 1)).astype(jnp.bfloat16)

    w1 = prep_w(params["w1"], params["scale1"])
    w2 = prep_w(params["w2"], params["scale2"])
    b1 = params["shift1"].reshape(cout, 1).astype(jnp.float32)
    b2 = params["shift2"].reshape(cout, 1).astype(jnp.float32)
    masks = _border_masks(h, w)

    x_flat = x_nchw.reshape(n, cin, hw)   # contiguous reshape, no transpose

    kernel = functools.partial(_unet_block_kernel, img_w=w)
    out = pl.pallas_call(
        kernel,
        out_shape=jax.ShapeDtypeStruct((n, cout, hw), x_nchw.dtype),
        grid=(n,),
        in_specs=[
            pl.BlockSpec((1, cin, hw), lambda i: (i, 0, 0)),
            pl.BlockSpec((3, 3, cout, cin), lambda i: (0, 0, 0, 0)),
            pl.BlockSpec((cout, 1), lambda i: (0, 0)),
            pl.BlockSpec((3, 3, cout, cout), lambda i: (0, 0, 0, 0)),
            pl.BlockSpec((cout, 1), lambda i: (0, 0)),
            pl.BlockSpec((3, 3, 1, hw), lambda i: (0, 0, 0, 0)),
        ],
        out_specs=pl.BlockSpec((1, cout, hw), lambda i: (i, 0, 0)),
        compiler_params=pltpu.CompilerParams(
            dimension_semantics=("parallel",)),
    )(x_flat, w1, b1, w2, b2, masks)
    return out.reshape(n, cout, h, w)


def init_params(key, in_channels, out_channels, eps=1e-5):
    """Deterministic synthetic parameters mirroring the PyTorch module shapes."""
    ks = jax.random.split(key, 10)

    def conv_w(k, cin, cout):
        # PyTorch Conv2d weight layout: (Cout, Cin, 3, 3)
        return jax.random.normal(k, (cout, cin, 3, 3), jnp.float32) * 0.1

    def bn(kg, kb, km, kv, c):
        gamma = 1.0 + 0.1 * jax.random.normal(kg, (c,), jnp.float32)
        beta = 0.1 * jax.random.normal(kb, (c,), jnp.float32)
        mean = 0.1 * jax.random.normal(km, (c,), jnp.float32)
        var = 1.0 + 0.1 * jax.random.uniform(kv, (c,), jnp.float32)
        scale = gamma / jnp.sqrt(var + eps)
        shift = beta - mean * scale
        return scale, shift

    w1 = conv_w(ks[0], in_channels, out_channels)
    scale1, shift1 = bn(ks[1], ks[2], ks[3], ks[4], out_channels)
    w2 = conv_w(ks[5], out_channels, out_channels)
    scale2, shift2 = bn(ks[6], ks[7], ks[8], ks[9], out_channels)
    return dict(w1=w1, scale1=scale1, shift1=shift1,
                w2=w2, scale2=scale2, shift2=shift2)


# ---------- pure-JAX reference (f32) for a correctness sanity check ----------
def _ref_stage(x_nchw, w_oihw, scale, shift):
    y = lax.conv_general_dilated(
        x_nchw, w_oihw, window_strides=(1, 1), padding=((1, 1), (1, 1)),
        dimension_numbers=("NCHW", "OIHW", "NCHW"))
    y = y * scale[None, :, None, None] + shift[None, :, None, None]
    return _elu(y)


def unet2d_block_ref(x_nchw, params):
    y = _ref_stage(x_nchw, params["w1"], params["scale1"], params["shift1"])
    return _ref_stage(y, params["w2"], params["scale2"], params["shift2"])


if __name__ == "__main__":
    key = jax.random.PRNGKey(0)
    k_x, k_p = jax.random.split(key)

    N, Cin, Cout, H, W = 2, 4, 8, 16, 16
    x = jax.random.normal(k_x, (N, Cin, H, W), jnp.float32)  # NCHW, like PyTorch
    params = init_params(k_p, Cin, Cout)

    out = jax.block_until_ready(unet2d_block(x, params))
    ref = jax.block_until_ready(unet2d_block_ref(x, params))

    assert out.shape == (N, Cout, H, W)
    max_err = float(jnp.max(jnp.abs(out - ref)))
    # bf16 MXU inputs with f32 accumulation vs a pure-f32 reference.
    assert jnp.allclose(out, ref, atol=5e-2, rtol=5e-2), f"mismatch: {max_err}"

    print("KERNEL_OK")
</pallas_src>

<mosaic_0001>
module attributes {stable_mosaic.version = 11 : i64} {
  func.func @_unet_block_kernel(%arg0: i32, %arg1: memref<1x4x256xf32, #tpu.memory_space<vmem>>, %arg2: memref<3x3x8x4xbf16, #tpu.memory_space<vmem>>, %arg3: memref<8x1xf32, #tpu.memory_space<vmem>>, %arg4: memref<3x3x8x8xbf16, #tpu.memory_space<vmem>>, %arg5: memref<8x1xf32, #tpu.memory_space<vmem>>, %arg6: memref<3x3x1x256xf32, #tpu.memory_space<vmem>>, %arg7: memref<1x8x256xf32, #tpu.memory_space<vmem>>) attributes {dimension_semantics = [#tpu.dimension_semantics<parallel>], iteration_bounds = array<i64: 2>, scalar_prefetch = 0 : i64, scratch_operands = 0 : i64, tpu.core_type = #tpu.core_type<tc>, window_params = [{transform_indices = @transform_0, window_bounds = array<i64: 1, 4, 256>}, {pipeline_mode = #tpu.pipeline_mode<synchronous>, transform_indices = @transform_1, window_bounds = array<i64: 3, 3, 8, 4>}, {pipeline_mode = #tpu.pipeline_mode<synchronous>, transform_indices = @transform_2, window_bounds = array<i64: 8, 1>}, {pipeline_mode = #tpu.pipeline_mode<synchronous>, transform_indices = @transform_3, window_bounds = array<i64: 3, 3, 8, 8>}, {pipeline_mode = #tpu.pipeline_mode<synchronous>, transform_indices = @transform_4, window_bounds = array<i64: 8, 1>}, {pipeline_mode = #tpu.pipeline_mode<synchronous>, transform_indices = @transform_5, window_bounds = array<i64: 3, 3, 1, 256>}, {transform_indices = @transform_6, window_bounds = array<i64: 1, 8, 256>}]} {
    %c0 = arith.constant 0 : index
    %c0_0 = arith.constant 0 : index
    %c0_1 = arith.constant 0 : index
    %0 = vector.load %arg1[%c0, %c0_0, %c0_1] : memref<1x4x256xf32, #tpu.memory_space<vmem>>, vector<1x4x256xf32>
    %1 = vector.shape_cast %0 : vector<1x4x256xf32> to vector<4x256xf32>
    %cst = arith.constant 0.000000e+00 : f32
    %2 = vector.broadcast %cst : f32 to vector<8x256xf32>
    %3 = vector.extract_strided_slice %1 {offsets = [0, 239], sizes = [4, 17], strides = [1, 1]} : vector<4x256xf32> to vector<4x17xf32>
    %4 = vector.extract_strided_slice %1 {offsets = [0, 0], sizes = [4, 239], strides = [1, 1]} : vector<4x256xf32> to vector<4x239xf32>
    %5 = tpu.concatenate %3, %4 in 1 : vector<4x17xf32>, vector<4x239xf32> -> vector<4x256xf32>
    %c0_2 = arith.constant 0 : index
    %c0_3 = arith.constant 0 : index
    %c0_4 = arith.constant 0 : index
    %c0_5 = arith.constant 0 : index
    %6 = vector.load %arg6[%c0_2, %c0_3, %c0_4, %c0_5] : memref<3x3x1x256xf32, #tpu.memory_space<vmem>>, vector<1x1x1x256xf32>
    %7 = vector.shape_cast %6 : vector<1x1x1x256xf32> to vector<1x256xf32>
    %8 = vector.broadcast %7 : vector<1x256xf32> to vector<4x256xf32>
    %9 = arith.mulf %5, %8 : vector<4x256xf32>
    %c0_6 = arith.constant 0 : index
    %c0_7 = arith.constant 0 : index
    %c0_8 = arith.constant 0 : index
    %c0_9 = arith.constant 0 : index
    %10 = vector.load %arg2[%c0_6, %c0_7, %c0_8, %c0_9] : memref<3x3x8x4xbf16, #tpu.memory_space<vmem>>, vector<1x1x8x4xbf16>
    %11 = vector.shape_cast %10 : vector<1x1x8x4xbf16> to vector<8x4xbf16>
    %12 = arith.truncf %9 : vector<4x256xf32> to vector<4x256xbf16>
    %cst_10 = arith.constant dense<0.000000e+00> : vector<8x256xf32>
    %13 = tpu.matmul %11, %12, %cst_10 {dimension_numbers = #tpu.dot_dimension_numbers<[1], [0], [0], [1], [0, 0, 1, 1], [], []>} : vector<8x4xbf16>, vector<4x256xbf16>, vector<8x256xf32> -> vector<8x256xf32>
    %14 = arith.addf %2, %13 : vector<8x256xf32>
    %15 = vector.extract_strided_slice %1 {offsets = [0, 240], sizes = [4, 16], strides = [1, 1]} : vector<4x256xf32> to vector<4x16xf32>
    %16 = vector.extract_strided_slice %1 {offsets = [0, 0], sizes = [4, 240], strides = [1, 1]} : vector<4x256xf32> to vector<4x240xf32>
    %17 = tpu.concatenate %15, %16 in 1 : vector<4x16xf32>, vector<4x240xf32> -> vector<4x256xf32>
    %c0_11 = arith.constant 0 : index
    %c1 = arith.constant 1 : index
    %c0_12 = arith.constant 0 : index
    %c0_13 = arith.constant 0 : index
    %18 = vector.load %arg6[%c0_11, %c1, %c0_12, %c0_13] : memref<3x3x1x256xf32, #tpu.memory_space<vmem>>, vector<1x1x1x256xf32>
    %19 = vector.shape_cast %18 : vector<1x1x1x256xf32> to vector<1x256xf32>
    %20 = vector.broadcast %19 : vector<1x256xf32> to vector<4x256xf32>
    %21 = arith.mulf %17, %20 : vector<4x256xf32>
    %c0_14 = arith.constant 0 : index
    %c1_15 = arith.constant 1 : index
    %c0_16 = arith.constant 0 : index
    %c0_17 = arith.constant 0 : index
    %22 = vector.load %arg2[%c0_14, %c1_15, %c0_16, %c0_17] : memref<3x3x8x4xbf16, #tpu.memory_space<vmem>>, vector<1x1x8x4xbf16>
    %23 = vector.shape_cast %22 : vector<1x1x8x4xbf16> to vector<8x4xbf16>
    %24 = arith.truncf %21 : vector<4x256xf32> to vector<4x256xbf16>
    %cst_18 = arith.constant dense<0.000000e+00> : vector<8x256xf32>
    %25 = tpu.matmul %23, %24, %cst_18 {dimension_numbers = #tpu.dot_dimension_numbers<[1], [0], [0], [1], [0, 0, 1, 1], [], []>} : vector<8x4xbf16>, vector<4x256xbf16>, vector<8x256xf32> -> vector<8x256xf32>
    %26 = arith.addf %14, %25 : vector<8x256xf32>
    %27 = vector.extract_strided_slice %1 {offsets = [0, 241], sizes = [4, 15], strides = [1, 1]} : vector<4x256xf32> to vector<4x15xf32>
    %28 = vector.extract_strided_slice %1 {offsets = [0, 0], sizes = [4, 241], strides = [1, 1]} : vector<4x256xf32> to vector<4x241xf32>
    %29 = tpu.concatenate %27, %28 in 1 : vector<4x15xf32>, vector<4x241xf32> -> vector<4x256xf32>
    %c0_19 = arith.constant 0 : index
    %c2 = arith.constant 2 : index
    %c0_20 = arith.constant 0 : index
    %c0_21 = arith.constant 0 : index
    %30 = vector.load %arg6[%c0_19, %c2, %c0_20, %c0_21] : memref<3x3x1x256xf32, #tpu.memory_space<vmem>>, vector<1x1x1x256xf32>
    %31 = vector.shape_cast %30 : vector<1x1x1x256xf32> to vector<1x256xf32>
    %32 = vector.broadcast %31 : vector<1x256xf32> to vector<4x256xf32>
    %33 = arith.mulf %29, %32 : vector<4x256xf32>
    %c0_22 = arith.constant 0 : index
    %c2_23 = arith.constant 2 : index
    %c0_24 = arith.constant 0 : index
    %c0_25 = arith.constant 0 : index
    %34 = vector.load %arg2[%c0_22, %c2_23, %c0_24, %c0_25] : memref<3x3x8x4xbf16, #tpu.memory_space<vmem>>, vector<1x1x8x4xbf16>
    %35 = vector.shape_cast %34 : vector<1x1x8x4xbf16> to vector<8x4xbf16>
    %36 = arith.truncf %33 : vector<4x256xf32> to vector<4x256xbf16>
    %cst_26 = arith.constant dense<0.000000e+00> : vector<8x256xf32>
    %37 = tpu.matmul %35, %36, %cst_26 {dimension_numbers = #tpu.dot_dimension_numbers<[1], [0], [0], [1], [0, 0, 1, 1], [], []>} : vector<8x4xbf16>, vector<4x256xbf16>, vector<8x256xf32> -> vector<8x256xf32>
    %38 = arith.addf %26, %37 : vector<8x256xf32>
    %39 = vector.extract_strided_slice %1 {offsets = [0, 255], sizes = [4, 1], strides = [1, 1]} : vector<4x256xf32> to vector<4x1xf32>
    %40 = vector.extract_strided_slice %1 {offsets = [0, 0], sizes = [4, 255], strides = [1, 1]} : vector<4x256xf32> to vector<4x255xf32>
    %41 = tpu.concatenate %39, %40 in 1 : vector<4x1xf32>, vector<4x255xf32> -> vector<4x256xf32>
    %c1_27 = arith.constant 1 : index
    %c0_28 = arith.constant 0 : index
    %c0_29 = arith.constant 0 : index
    %c0_30 = arith.constant 0 : index
    %42 = vector.load %arg6[%c1_27, %c0_28, %c0_29, %c0_30] : memref<3x3x1x256xf32, #tpu.memory_space<vmem>>, vector<1x1x1x256xf32>
    %43 = vector.shape_cast %42 : vector<1x1x1x256xf32> to vector<1x256xf32>
    %44 = vector.broadcast %43 : vector<1x256xf32> to vector<4x256xf32>
    %45 = arith.mulf %41, %44 : vector<4x256xf32>
    %c1_31 = arith.constant 1 : index
    %c0_32 = arith.constant 0 : index
    %c0_33 = arith.constant 0 : index
    %c0_34 = arith.constant 0 : index
    %46 = vector.load %arg2[%c1_31, %c0_32, %c0_33, %c0_34] : memref<3x3x8x4xbf16, #tpu.memory_space<vmem>>, vector<1x1x8x4xbf16>
    %47 = vector.shape_cast %46 : vector<1x1x8x4xbf16> to vector<8x4xbf16>
    %48 = arith.truncf %45 : vector<4x256xf32> to vector<4x256xbf16>
    %cst_35 = arith.constant dense<0.000000e+00> : vector<8x256xf32>
    %49 = tpu.matmul %47, %48, %cst_35 {dimension_numbers = #tpu.dot_dimension_numbers<[1], [0], [0], [1], [0, 0, 1, 1], [], []>} : vector<8x4xbf16>, vector<4x256xbf16>, vector<8x256xf32> -> vector<8x256xf32>
    %50 = arith.addf %38, %49 : vector<8x256xf32>
    %c1_36 = arith.constant 1 : index
    %c1_37 = arith.constant 1 : index
    %c0_38 = arith.constant 0 : index
    %c0_39 = arith.constant 0 : index
    %51 = vector.load %arg2[%c1_36, %c1_37, %c0_38, %c0_39] : memref<3x3x8x4xbf16, #tpu.memory_space<vmem>>, vector<1x1x8x4xbf16>
    %52 = vector.shape_cast %51 : vector<1x1x8x4xbf16> to vector<8x4xbf16>
    %53 = arith.truncf %1 : vector<4x256xf32> to vector<4x256xbf16>
    %cst_40 = arith.constant dense<0.000000e+00> : vector<8x256xf32>
    %54 = tpu.matmul %52, %53, %cst_40 {dimension_numbers = #tpu.dot_dimension_numbers<[1], [0], [0], [1], [0, 0, 1, 1], [], []>} : vector<8x4xbf16>, vector<4x256xbf16>, vector<8x256xf32> -> vector<8x256xf32>
    %55 = arith.addf %50, %54 : vector<8x256xf32>
    %56 = vector.extract_strided_slice %1 {offsets = [0, 1], sizes = [4, 255], strides = [1, 1]} : vector<4x256xf32> to vector<4x255xf32>
    %57 = vector.extract_strided_slice %1 {offsets = [0, 0], sizes = [4, 1], strides = [1, 1]} : vector<4x256xf32> to vector<4x1xf32>
    %58 = tpu.concatenate %56, %57 in 1 : vector<4x255xf32>, vector<4x1xf32> -> vector<4x256xf32>
    %c1_41 = arith.constant 1 : index
    %c2_42 = arith.constant 2 : index
    %c0_43 = arith.constant 0 : index
    %c0_44 = arith.constant 0 : index
    %59 = vector.load %arg6[%c1_41, %c2_42, %c0_43, %c0_44] : memref<3x3x1x256xf32, #tpu.memory_space<vmem>>, vector<1x1x1x256xf32>
    %60 = vector.shape_cast %59 : vector<1x1x1x256xf32> to vector<1x256xf32>
    %61 = vector.broadcast %60 : vector<1x256xf32> to vector<4x256xf32>
    %62 = arith.mulf %58, %61 : vector<4x256xf32>
    %c1_45 = arith.constant 1 : index
    %c2_46 = arith.constant 2 : index
    %c0_47 = arith.constant 0 : index
    %c0_48 = arith.constant 0 : index
    %63 = vector.load %arg2[%c1_45, %c2_46, %c0_47, %c0_48] : memref<3x3x8x4xbf16, #tpu.memory_space<vmem>>, vector<1x1x8x4xbf16>
    %64 = vector.shape_cast %63 : vector<1x1x8x4xbf16> to vector<8x4xbf16>
    %65 = arith.truncf %62 : vector<4x256xf32> to vector<4x256xbf16>
    %cst_49 = arith.constant dense<0.000000e+00> : vector<8x256xf32>
    %66 = tpu.matmul %64, %65, %cst_49 {dimension_numbers = #tpu.dot_dimension_numbers<[1], [0], [0], [1], [0, 0, 1, 1], [], []>} : vector<8x4xbf16>, vector<4x256xbf16>, vector<8x256xf32> -> vector<8x256xf32>
    %67 = arith.addf %55, %66 : vector<8x256xf32>
    %68 = vector.extract_strided_slice %1 {offsets = [0, 15], sizes = [4, 241], strides = [1, 1]} : vector<4x256xf32> to vector<4x241xf32>
    %69 = vector.extract_strided_slice %1 {offsets = [0, 0], sizes = [4, 15], strides = [1, 1]} : vector<4x256xf32> to vector<4x15xf32>
    %70 = tpu.concatenate %68, %69 in 1 : vector<4x241xf32>, vector<4x15xf32> -> vector<4x256xf32>
    %c2_50 = arith.constant 2 : index
    %c0_51 = arith.constant 0 : index
    %c0_52 = arith.constant 0 : index
    %c0_53 = arith.constant 0 : index
    %71 = vector.load %arg6[%c2_50, %c0_51, %c0_52, %c0_53] : memref<3x3x1x256xf32, #tpu.memory_space<vmem>>, vector<1x1x1x256xf32>
    %72 = vector.shape_cast %71 : vector<1x1x1x256xf32> to vector<1x256xf32>
    %73 = vector.broadcast %72 : vector<1x256xf32> to vector<4x256xf32>
    %74 = arith.mulf %70, %73 : vector<4x256xf32>
    %c2_54 = arith.constant 2 : index
    %c0_55 = arith.constant 0 : index
    %c0_56 = arith.constant 0 : index
    %c0_57 = arith.constant 0 : index
    %75 = vector.load %arg2[%c2_54, %c0_55, %c0_56, %c0_57] : memref<3x3x8x4xbf16, #tpu.memory_space<vmem>>, vector<1x1x8x4xbf16>
    %76 = vector.shape_cast %75 : vector<1x1x8x4xbf16> to vector<8x4xbf16>
    %77 = arith.truncf %74 : vector<4x256xf32> to vector<4x256xbf16>
    %cst_58 = arith.constant dense<0.000000e+00> : vector<8x256xf32>
    %78 = tpu.matmul %76, %77, %cst_58 {dimension_numbers = #tpu.dot_dimension_numbers<[1], [0], [0], [1], [0, 0, 1, 1], [], []>} : vector<8x4xbf16>, vector<4x256xbf16>, vector<8x256xf32> -> vector<8x256xf32>
    %79 = arith.addf %67, %78 : vector<8x256xf32>
    %80 = vector.extract_strided_slice %1 {offsets = [0, 16], sizes = [4, 240], strides = [1, 1]} : vector<4x256xf32> to vector<4x240xf32>
    %81 = vector.extract_strided_slice %1 {offsets = [0, 0], sizes = [4, 16], strides = [1, 1]} : vector<4x256xf32> to vector<4x16xf32>
    %82 = tpu.concatenate %80, %81 in 1 : vector<4x240xf32>, vector<4x16xf32> -> vector<4x256xf32>
    %c2_59 = arith.constant 2 : index
    %c1_60 = arith.constant 1 : index
    %c0_61 = arith.constant 0 : index
    %c0_62 = arith.constant 0 : index
    %83 = vector.load %arg6[%c2_59, %c1_60, %c0_61, %c0_62] : memref<3x3x1x256xf32, #tpu.memory_space<vmem>>, vector<1x1x1x256xf32>
    %84 = vector.shape_cast %83 : vector<1x1x1x256xf32> to vector<1x256xf32>
    %85 = vector.broadcast %84 : vector<1x256xf32> to vector<4x256xf32>
    %86 = arith.mulf %82, %85 : vector<4x256xf32>
    %c2_63 = arith.constant 2 : index
    %c1_64 = arith.constant 1 : index
    %c0_65 = arith.constant 0 : index
    %c0_66 = arith.constant 0 : index
    %87 = vector.load %arg2[%c2_63, %c1_64, %c0_65, %c0_66] : memref<3x3x8x4xbf16, #tpu.memory_space<vmem>>, vector<1x1x8x4xbf16>
    %88 = vector.shape_cast %87 : vector<1x1x8x4xbf16> to vector<8x4xbf16>
    %89 = arith.truncf %86 : vector<4x256xf32> to vector<4x256xbf16>
    %cst_67 = arith.constant dense<0.000000e+00> : vector<8x256xf32>
    %90 = tpu.matmul %88, %89, %cst_67 {dimension_numbers = #tpu.dot_dimension_numbers<[1], [0], [0], [1], [0, 0, 1, 1], [], []>} : vector<8x4xbf16>, vector<4x256xbf16>, vector<8x256xf32> -> vector<8x256xf32>
    %91 = arith.addf %79, %90 : vector<8x256xf32>
    %92 = vector.extract_strided_slice %1 {offsets = [0, 17], sizes = [4, 239], strides = [1, 1]} : vector<4x256xf32> to vector<4x239xf32>
    %93 = vector.extract_strided_slice %1 {offsets = [0, 0], sizes = [4, 17], strides = [1, 1]} : vector<4x256xf32> to vector<4x17xf32>
    %94 = tpu.concatenate %92, %93 in 1 : vector<4x239xf32>, vector<4x17xf32> -> vector<4x256xf32>
    %c2_68 = arith.constant 2 : index
    %c2_69 = arith.constant 2 : index
    %c0_70 = arith.constant 0 : index
    %c0_71 = arith.constant 0 : index
    %95 = vector.load %arg6[%c2_68, %c2_69, %c0_70, %c0_71] : memref<3x3x1x256xf32, #tpu.memory_space<vmem>>, vector<1x1x1x256xf32>
    %96 = vector.shape_cast %95 : vector<1x1x1x256xf32> to vector<1x256xf32>
    %97 = vector.broadcast %96 : vector<1x256xf32> to vector<4x256xf32>
    %98 = arith.mulf %94, %97 : vector<4x256xf32>
    %c2_72 = arith.constant 2 : index
    %c2_73 = arith.constant 2 : index
    %c0_74 = arith.constant 0 : index
    %c0_75 = arith.constant 0 : index
    %99 = vector.load %arg2[%c2_72, %c2_73, %c0_74, %c0_75] : memref<3x3x8x4xbf16, #tpu.memory_space<vmem>>, vector<1x1x8x4xbf16>
    %100 = vector.shape_cast %99 : vector<1x1x8x4xbf16> to vector<8x4xbf16>
    %101 = arith.truncf %98 : vector<4x256xf32> to vector<4x256xbf16>
    %cst_76 = arith.constant dense<0.000000e+00> : vector<8x256xf32>
    %102 = tpu.matmul %100, %101, %cst_76 {dimension_numbers = #tpu.dot_dimension_numbers<[1], [0], [0], [1], [0, 0, 1, 1], [], []>} : vector<8x4xbf16>, vector<4x256xbf16>, vector<8x256xf32> -> vector<8x256xf32>
    %103 = arith.addf %91, %102 : vector<8x256xf32>
    %c0_77 = arith.constant 0 : index
    %c0_78 = arith.constant 0 : index
    %104 = vector.load %arg3[%c0_77, %c0_78] : memref<8x1xf32, #tpu.memory_space<vmem>>, vector<8x1xf32>
    %105 = vector.broadcast %104 : vector<8x1xf32> to vector<8x256xf32>
    %106 = arith.addf %103, %105 : vector<8x256xf32>
    %cst_79 = arith.constant 0.000000e+00 : f32
    %107 = vector.broadcast %cst_79 : f32 to vector<8x256xf32>
    %108 = arith.cmpf ogt, %106, %107 : vector<8x256xf32>
    %cst_80 = arith.constant 0.000000e+00 : f32
    %109 = vector.broadcast %cst_80 : f32 to vector<8x256xf32>
    %110 = arith.minimumf %106, %109 : vector<8x256xf32>
    %111 = math.exp %110 : vector<8x256xf32>
    %cst_81 = arith.constant 1.000000e+00 : f32
    %112 = vector.broadcast %cst_81 : f32 to vector<8x256xf32>
    %113 = arith.subf %111, %112 : vector<8x256xf32>
    %114 = arith.select %108, %106, %113 : vector<8x256xi1>, vector<8x256xf32>
    %cst_82 = arith.constant 0.000000e+00 : f32
    %115 = vector.broadcast %cst_82 : f32 to vector<8x256xf32>
    %116 = vector.extract_strided_slice %114 {offsets = [0, 239], sizes = [8, 17], strides = [1, 1]} : vector<8x256xf32> to vector<8x17xf32>
    %117 = vector.extract_strided_slice %114 {offsets = [0, 0], sizes = [8, 239], strides = [1, 1]} : vector<8x256xf32> to vector<8x239xf32>
    %118 = tpu.concatenate %116, %117 in 1 : vector<8x17xf32>, vector<8x239xf32> -> vector<8x256xf32>
    %c0_83 = arith.constant 0 : index
    %c0_84 = arith.constant 0 : index
    %c0_85 = arith.constant 0 : index
    %c0_86 = arith.constant 0 : index
    %119 = vector.load %arg6[%c0_83, %c0_84, %c0_85, %c0_86] : memref<3x3x1x256xf32, #tpu.memory_space<vmem>>, vector<1x1x1x256xf32>
    %120 = vector.shape_cast %119 : vector<1x1x1x256xf32> to vector<1x256xf32>
    %121 = vector.broadcast %120 : vector<1x256xf32> to vector<8x256xf32>
    %122 = arith.mulf %118, %121 : vector<8x256xf32>
    %c0_87 = arith.constant 0 : index
    %c0_88 = arith.constant 0 : index
    %c0_89 = arith.constant 0 : index
    %c0_90 = arith.constant 0 : index
    %123 = vector.load %arg4[%c0_87, %c0_88, %c0_89, %c0_90] : memref<3x3x8x8xbf16, #tpu.memory_space<vmem>>, vector<1x1x8x8xbf16>
    %124 = vector.shape_cast %123 : vector<1x1x8x8xbf16> to vector<8x8xbf16>
    %125 = arith.truncf %122 : vector<8x256xf32> to vector<8x256xbf16>
    %cst_91 = arith.constant dense<0.000000e+00> : vector<8x256xf32>
    %126 = tpu.matmul %124, %125, %cst_91 {dimension_numbers = #tpu.dot_dimension_numbers<[1], [0], [0], [1], [0, 0, 1, 1], [], []>} : vector<8x8xbf16>, vector<8x256xbf16>, vector<8x256xf32> -> vector<8x256xf32>
    %127 = arith.addf %115, %126 : vector<8x256xf32>
    %128 = vector.extract_strided_slice %114 {offsets = [0, 240], sizes = [8, 16], strides = [1, 1]} : vector<8x256xf32> to vector<8x16xf32>
    %129 = vector.extract_strided_slice %114 {offsets = [0, 0], sizes = [8, 240], strides = [1, 1]} : vector<8x256xf32> to vector<8x240xf32>
    %130 = tpu.concatenate %128, %129 in 1 : vector<8x16xf32>, vector<8x240xf32> -> vector<8x256xf32>
    %c0_92 = arith.constant 0 : index
    %c1_93 = arith.constant 1 : index
    %c0_94 = arith.constant 0 : index
    %c0_95 = arith.constant 0 : index
    %131 = vector.load %arg6[%c0_92, %c1_93, %c0_94, %c0_95] : memref<3x3x1x256xf32, #tpu.memory_space<vmem>>, vector<1x1x1x256xf32>
    %132 = vector.shape_cast %131 : vector<1x1x1x256xf32> to vector<1x256xf32>
    %133 = vector.broadcast %132 : vector<1x256xf32> to vector<8x256xf32>
    %134 = arith.mulf %130, %133 : vector<8x256xf32>
    %c0_96 = arith.constant 0 : index
    %c1_97 = arith.constant 1 : index
    %c0_98 = arith.constant 0 : index
    %c0_99 = arith.constant 0 : index
    %135 = vector.load %arg4[%c0_96, %c1_97, %c0_98, %c0_99] : memref<3x3x8x8xbf16, #tpu.memory_space<vmem>>, vector<1x1x8x8xbf16>
    %136 = vector.shape_cast %135 : vector<1x1x8x8xbf16> to vector<8x8xbf16>
    %137 = arith.truncf %134 : vector<8x256xf32> to vector<8x256xbf16>
    %cst_100 = arith.constant dense<0.000000e+00> : vector<8x256xf32>
    %138 = tpu.matmul %136, %137, %cst_100 {dimension_numbers = #tpu.dot_dimension_numbers<[1], [0], [0], [1], [0, 0, 1, 1], [], []>} : vector<8x8xbf16>, vector<8x256xbf16>, vector<8x256xf32> -> vector<8x256xf32>
    %139 = arith.addf %127, %138 : vector<8x256xf32>
    %140 = vector.extract_strided_slice %114 {offsets = [0, 241], sizes = [8, 15], strides = [1, 1]} : vector<8x256xf32> to vector<8x15xf32>
    %141 = vector.extract_strided_slice %114 {offsets = [0, 0], sizes = [8, 241], strides = [1, 1]} : vector<8x256xf32> to vector<8x241xf32>
    %142 = tpu.concatenate %140, %141 in 1 : vector<8x15xf32>, vector<8x241xf32> -> vector<8x256xf32>
    %c0_101 = arith.constant 0 : index
    %c2_102 = arith.constant 2 : index
    %c0_103 = arith.constant 0 : index
    %c0_104 = arith.constant 0 : index
    %143 = vector.load %arg6[%c0_101, %c2_102, %c0_103, %c0_104] : memref<3x3x1x256xf32, #tpu.memory_space<vmem>>, vector<1x1x1x256xf32>
    %144 = vector.shape_cast %143 : vector<1x1x1x256xf32> to vector<1x256xf32>
    %145 = vector.broadcast %144 : vector<1x256xf32> to vector<8x256xf32>
    %146 = arith.mulf %142, %145 : vector<8x256xf32>
    %c0_105 = arith.constant 0 : index
    %c2_106 = arith.constant 2 : index
    %c0_107 = arith.constant 0 : index
    %c0_108 = arith.constant 0 : index
    %147 = vector.load %arg4[%c0_105, %c2_106, %c0_107, %c0_108] : memref<3x3x8x8xbf16, #tpu.memory_space<vmem>>, vector<1x1x8x8xbf16>
    %148 = vector.shape_cast %147 : vector<1x1x8x8xbf16> to vector<8x8xbf16>
    %149 = arith.truncf %146 : vector<8x256xf32> to vector<8x256xbf16>
    %cst_109 = arith.constant dense<0.000000e+00> : vector<8x256xf32>
    %150 = tpu.matmul %148, %149, %cst_109 {dimension_numbers = #tpu.dot_dimension_numbers<[1], [0], [0], [1], [0, 0, 1, 1], [], []>} : vector<8x8xbf16>, vector<8x256xbf16>, vector<8x256xf32> -> vector<8x256xf32>
    %151 = arith.addf %139, %150 : vector<8x256xf32>
    %152 = vector.extract_strided_slice %114 {offsets = [0, 255], sizes = [8, 1], strides = [1, 1]} : vector<8x256xf32> to vector<8x1xf32>
    %153 = vector.extract_strided_slice %114 {offsets = [0, 0], sizes = [8, 255], strides = [1, 1]} : vector<8x256xf32> to vector<8x255xf32>
    %154 = tpu.concatenate %152, %153 in 1 : vector<8x1xf32>, vector<8x255xf32> -> vector<8x256xf32>
    %c1_110 = arith.constant 1 : index
    %c0_111 = arith.constant 0 : index
    %c0_112 = arith.constant 0 : index
    %c0_113 = arith.constant 0 : index
    %155 = vector.load %arg6[%c1_110, %c0_111, %c0_112, %c0_113] : memref<3x3x1x256xf32, #tpu.memory_space<vmem>>, vector<1x1x1x256xf32>
    %156 = vector.shape_cast %155 : vector<1x1x1x256xf32> to vector<1x256xf32>
    %157 = vector.broadcast %156 : vector<1x256xf32> to vector<8x256xf32>
    %158 = arith.mulf %154, %157 : vector<8x256xf32>
    %c1_114 = arith.constant 1 : index
    %c0_115 = arith.constant 0 : index
    %c0_116 = arith.constant 0 : index
    %c0_117 = arith.constant 0 : index
    %159 = vector.load %arg4[%c1_114, %c0_115, %c0_116, %c0_117] : memref<3x3x8x8xbf16, #tpu.memory_space<vmem>>, vector<1x1x8x8xbf16>
    %160 = vector.shape_cast %159 : vector<1x1x8x8xbf16> to vector<8x8xbf16>
    %161 = arith.truncf %158 : vector<8x256xf32> to vector<8x256xbf16>
    %cst_118 = arith.constant dense<0.000000e+00> : vector<8x256xf32>
    %162 = tpu.matmul %160, %161, %cst_118 {dimension_numbers = #tpu.dot_dimension_numbers<[1], [0], [0], [1], [0, 0, 1, 1], [], []>} : vector<8x8xbf16>, vector<8x256xbf16>, vector<8x256xf32> -> vector<8x256xf32>
    %163 = arith.addf %151, %162 : vector<8x256xf32>
    %c1_119 = arith.constant 1 : index
    %c1_120 = arith.constant 1 : index
    %c0_121 = arith.constant 0 : index
    %c0_122 = arith.constant 0 : index
    %164 = vector.load %arg4[%c1_119, %c1_120, %c0_121, %c0_122] : memref<3x3x8x8xbf16, #tpu.memory_space<vmem>>, vector<1x1x8x8xbf16>
    %165 = vector.shape_cast %164 : vector<1x1x8x8xbf16> to vector<8x8xbf16>
    %166 = arith.truncf %114 : vector<8x256xf32> to vector<8x256xbf16>
    %cst_123 = arith.constant dense<0.000000e+00> : vector<8x256xf32>
    %167 = tpu.matmul %165, %166, %cst_123 {dimension_numbers = #tpu.dot_dimension_numbers<[1], [0], [0], [1], [0, 0, 1, 1], [], []>} : vector<8x8xbf16>, vector<8x256xbf16>, vector<8x256xf32> -> vector<8x256xf32>
    %168 = arith.addf %163, %167 : vector<8x256xf32>
    %169 = vector.extract_strided_slice %114 {offsets = [0, 1], sizes = [8, 255], strides = [1, 1]} : vector<8x256xf32> to vector<8x255xf32>
    %170 = vector.extract_strided_slice %114 {offsets = [0, 0], sizes = [8, 1], strides = [1, 1]} : vector<8x256xf32> to vector<8x1xf32>
    %171 = tpu.concatenate %169, %170 in 1 : vector<8x255xf32>, vector<8x1xf32> -> vector<8x256xf32>
    %c1_124 = arith.constant 1 : index
    %c2_125 = arith.constant 2 : index
    %c0_126 = arith.constant 0 : index
    %c0_127 = arith.constant 0 : index
    %172 = vector.load %arg6[%c1_124, %c2_125, %c0_126, %c0_127] : memref<3x3x1x256xf32, #tpu.memory_space<vmem>>, vector<1x1x1x256xf32>
    %173 = vector.shape_cast %172 : vector<1x1x1x256xf32> to vector<1x256xf32>
    %174 = vector.broadcast %173 : vector<1x256xf32> to vector<8x256xf32>
    %175 = arith.mulf %171, %174 : vector<8x256xf32>
    %c1_128 = arith.constant 1 : index
    %c2_129 = arith.constant 2 : index
    %c0_130 = arith.constant 0 : index
    %c0_131 = arith.constant 0 : index
    %176 = vector.load %arg4[%c1_128, %c2_129, %c0_130, %c0_131] : memref<3x3x8x8xbf16, #tpu.memory_space<vmem>>, vector<1x1x8x8xbf16>
    %177 = vector.shape_cast %176 : vector<1x1x8x8xbf16> to vector<8x8xbf16>
    %178 = arith.truncf %175 : vector<8x256xf32> to vector<8x256xbf16>
    %cst_132 = arith.constant dense<0.000000e+00> : vector<8x256xf32>
    %179 = tpu.matmul %177, %178, %cst_132 {dimension_numbers = #tpu.dot_dimension_numbers<[1], [0], [0], [1], [0, 0, 1, 1], [], []>} : vector<8x8xbf16>, vector<8x256xbf16>, vector<8x256xf32> -> vector<8x256xf32>
    %180 = arith.addf %168, %179 : vector<8x256xf32>
    %181 = vector.extract_strided_slice %114 {offsets = [0, 15], sizes = [8, 241], strides = [1, 1]} : vector<8x256xf32> to vector<8x241xf32>
    %182 = vector.extract_strided_slice %114 {offsets = [0, 0], sizes = [8, 15], strides = [1, 1]} : vector<8x256xf32> to vector<8x15xf32>
    %183 = tpu.concatenate %181, %182 in 1 : vector<8x241xf32>, vector<8x15xf32> -> vector<8x256xf32>
    %c2_133 = arith.constant 2 : index
    %c0_134 = arith.constant 0 : index
    %c0_135 = arith.constant 0 : index
    %c0_136 = arith.constant 0 : index
    %184 = vector.load %arg6[%c2_133, %c0_134, %c0_135, %c0_136] : memref<3x3x1x256xf32, #tpu.memory_space<vmem>>, vector<1x1x1x256xf32>
    %185 = vector.shape_cast %184 : vector<1x1x1x256xf32> to vector<1x256xf32>
    %186 = vector.broadcast %185 : vector<1x256xf32> to vector<8x256xf32>
    %187 = arith.mulf %183, %186 : vector<8x256xf32>
    %c2_137 = arith.constant 2 : index
    %c0_138 = arith.constant 0 : index
    %c0_139 = arith.constant 0 : index
    %c0_140 = arith.constant 0 : index
    %188 = vector.load %arg4[%c2_137, %c0_138, %c0_139, %c0_140] : memref<3x3x8x8xbf16, #tpu.memory_space<vmem>>, vector<1x1x8x8xbf16>
    %189 = vector.shape_cast %188 : vector<1x1x8x8xbf16> to vector<8x8xbf16>
    %190 = arith.truncf %187 : vector<8x256xf32> to vector<8x256xbf16>
    %cst_141 = arith.constant dense<0.000000e+00> : vector<8x256xf32>
    %191 = tpu.matmul %189, %190, %cst_141 {dimension_numbers = #tpu.dot_dimension_numbers<[1], [0], [0], [1], [0, 0, 1, 1], [], []>} : vector<8x8xbf16>, vector<8x256xbf16>, vector<8x256xf32> -> vector<8x256xf32>
    %192 = arith.addf %180, %191 : vector<8x256xf32>
    %193 = vector.extract_strided_slice %114 {offsets = [0, 16], sizes = [8, 240], strides = [1, 1]} : vector<8x256xf32> to vector<8x240xf32>
    %194 = vector.extract_strided_slice %114 {offsets = [0, 0], sizes = [8, 16], strides = [1, 1]} : vector<8x256xf32> to vector<8x16xf32>
    %195 = tpu.concatenate %193, %194 in 1 : vector<8x240xf32>, vector<8x16xf32> -> vector<8x256xf32>
    %c2_142 = arith.constant 2 : index
    %c1_143 = arith.constant 1 : index
    %c0_144 = arith.constant 0 : index
    %c0_145 = arith.constant 0 : index
    %196 = vector.load %arg6[%c2_142, %c1_143, %c0_144, %c0_145] : memref<3x3x1x256xf32, #tpu.memory_space<vmem>>, vector<1x1x1x256xf32>
    %197 = vector.shape_cast %196 : vector<1x1x1x256xf32> to vector<1x256xf32>
    %198 = vector.broadcast %197 : vector<1x256xf32> to vector<8x256xf32>
    %199 = arith.mulf %195, %198 : vector<8x256xf32>
    %c2_146 = arith.constant 2 : index
    %c1_147 = arith.constant 1 : index
    %c0_148 = arith.constant 0 : index
    %c0_149 = arith.constant 0 : index
    %200 = vector.load %arg4[%c2_146, %c1_147, %c0_148, %c0_149] : memref<3x3x8x8xbf16, #tpu.memory_space<vmem>>, vector<1x1x8x8xbf16>
    %201 = vector.shape_cast %200 : vector<1x1x8x8xbf16> to vector<8x8xbf16>
    %202 = arith.truncf %199 : vector<8x256xf32> to vector<8x256xbf16>
    %cst_150 = arith.constant dense<0.000000e+00> : vector<8x256xf32>
    %203 = tpu.matmul %201, %202, %cst_150 {dimension_numbers = #tpu.dot_dimension_numbers<[1], [0], [0], [1], [0, 0, 1, 1], [], []>} : vector<8x8xbf16>, vector<8x256xbf16>, vector<8x256xf32> -> vector<8x256xf32>
    %204 = arith.addf %192, %203 : vector<8x256xf32>
    %205 = vector.extract_strided_slice %114 {offsets = [0, 17], sizes = [8, 239], strides = [1, 1]} : vector<8x256xf32> to vector<8x239xf32>
    %206 = vector.extract_strided_slice %114 {offsets = [0, 0], sizes = [8, 17], strides = [1, 1]} : vector<8x256xf32> to vector<8x17xf32>
    %207 = tpu.concatenate %205, %206 in 1 : vector<8x239xf32>, vector<8x17xf32> -> vector<8x256xf32>
    %c2_151 = arith.constant 2 : index
    %c2_152 = arith.constant 2 : index
    %c0_153 = arith.constant 0 : index
    %c0_154 = arith.constant 0 : index
    %208 = vector.load %arg6[%c2_151, %c2_152, %c0_153, %c0_154] : memref<3x3x1x256xf32, #tpu.memory_space<vmem>>, vector<1x1x1x256xf32>
    %209 = vector.shape_cast %208 : vector<1x1x1x256xf32> to vector<1x256xf32>
    %210 = vector.broadcast %209 : vector<1x256xf32> to vector<8x256xf32>
    %211 = arith.mulf %207, %210 : vector<8x256xf32>
    %c2_155 = arith.constant 2 : index
    %c2_156 = arith.constant 2 : index
    %c0_157 = arith.constant 0 : index
    %c0_158 = arith.constant 0 : index
    %212 = vector.load %arg4[%c2_155, %c2_156, %c0_157, %c0_158] : memref<3x3x8x8xbf16, #tpu.memory_space<vmem>>, vector<1x1x8x8xbf16>
    %213 = vector.shape_cast %212 : vector<1x1x8x8xbf16> to vector<8x8xbf16>
    %214 = arith.truncf %211 : vector<8x256xf32> to vector<8x256xbf16>
    %cst_159 = arith.constant dense<0.000000e+00> : vector<8x256xf32>
    %215 = tpu.matmul %213, %214, %cst_159 {dimension_numbers = #tpu.dot_dimension_numbers<[1], [0], [0], [1], [0, 0, 1, 1], [], []>} : vector<8x8xbf16>, vector<8x256xbf16>, vector<8x256xf32> -> vector<8x256xf32>
    %216 = arith.addf %204, %215 : vector<8x256xf32>
    %c0_160 = arith.constant 0 : index
    %c0_161 = arith.constant 0 : index
    %217 = vector.load %arg5[%c0_160, %c0_161] : memref<8x1xf32, #tpu.memory_space<vmem>>, vector<8x1xf32>
    %218 = vector.broadcast %217 : vector<8x1xf32> to vector<8x256xf32>
    %219 = arith.addf %216, %218 : vector<8x256xf32>
    %cst_162 = arith.constant 0.000000e+00 : f32
    %220 = vector.broadcast %cst_162 : f32 to vector<8x256xf32>
    %221 = arith.cmpf ogt, %219, %220 : vector<8x256xf32>
    %cst_163 = arith.constant 0.000000e+00 : f32
    %222 = vector.broadcast %cst_163 : f32 to vector<8x256xf32>
    %223 = arith.minimumf %219, %222 : vector<8x256xf32>
    %224 = math.exp %223 : vector<8x256xf32>
    %cst_164 = arith.constant 1.000000e+00 : f32
    %225 = vector.broadcast %cst_164 : f32 to vector<8x256xf32>
    %226 = arith.subf %224, %225 : vector<8x256xf32>
    %227 = arith.select %221, %219, %226 : vector<8x256xi1>, vector<8x256xf32>
    %c0_165 = arith.constant 0 : index
    %c0_166 = arith.constant 0 : index
    %c0_167 = arith.constant 0 : index
    %228 = vector.load %arg7[%c0_165, %c0_166, %c0_167] : memref<1x8x256xf32, #tpu.memory_space<vmem>>, vector<1x8x256xf32>
    %229 = vector.shape_cast %228 : vector<1x8x256xf32> to vector<8x256xf32>
    %230 = vector.shape_cast %227 : vector<8x256xf32> to vector<1x8x256xf32>
    tpu.vector_store %arg7[%c0_165, %c0_166, %c0_167], %230 {strides = array<i32>} : memref<1x8x256xf32, #tpu.memory_space<vmem>>, vector<1x8x256xf32>,
    return
  }
  func.func @transform_0(%arg0: i32) -> (i32, i32, i32) {
    %c0_i32 = arith.constant 0 : i32
    %c0_i32_0 = arith.constant 0 : i32
    %c0_i32_1 = arith.constant 0 : i32
    return %arg0, %c0_i32, %c0_i32_0 : i32, i32, i32
  }
  func.func @transform_1(%arg0: i32) -> (i32, i32, i32, i32) {
    %c0_i32 = arith.constant 0 : i32
    %c0_i32_0 = arith.constant 0 : i32
    %c0_i32_1 = arith.constant 0 : i32
    %c0_i32_2 = arith.constant 0 : i32
    %c0_i32_3 = arith.constant 0 : i32
    return %c0_i32, %c0_i32_0, %c0_i32_1, %c0_i32_2 : i32, i32, i32, i32
  }
  func.func @transform_2(%arg0: i32) -> (i32, i32) {
    %c0_i32 = arith.constant 0 : i32
    %c0_i32_0 = arith.constant 0 : i32
    %c0_i32_1 = arith.constant 0 : i32
    return %c0_i32, %c0_i32_0 : i32, i32
  }
  func.func @transform_3(%arg0: i32) -> (i32, i32, i32, i32) {
    %c0_i32 = arith.constant 0 : i32
    %c0_i32_0 = arith.constant 0 : i32
    %c0_i32_1 = arith.constant 0 : i32
    %c0_i32_2 = arith.constant 0 : i32
    %c0_i32_3 = arith.constant 0 : i32
    return %c0_i32, %c0_i32_0, %c0_i32_1, %c0_i32_2 : i32, i32, i32, i32
  }
  func.func @transform_4(%arg0: i32) -> (i32, i32) {
    %c0_i32 = arith.constant 0 : i32
    %c0_i32_0 = arith.constant 0 : i32
    %c0_i32_1 = arith.constant 0 : i32
    return %c0_i32, %c0_i32_0 : i32, i32
  }
  func.func @transform_5(%arg0: i32) -> (i32, i32, i32, i32) {
    %c0_i32 = arith.constant 0 : i32
    %c0_i32_0 = arith.constant 0 : i32
    %c0_i32_1 = arith.constant 0 : i32
    %c0_i32_2 = arith.constant 0 : i32
    %c0_i32_3 = arith.constant 0 : i32
    return %c0_i32, %c0_i32_0, %c0_i32_1, %c0_i32_2 : i32, i32, i32, i32
  }
  func.func @transform_6(%arg0: i32) -> (i32, i32, i32) {
    %c0_i32 = arith.constant 0 : i32
    %c0_i32_0 = arith.constant 0 : i32
    %c0_i32_1 = arith.constant 0 : i32
    return %arg0, %c0_i32, %c0_i32_0 : i32, i32, i32
  }
}

</mosaic_0001>

<llo_original>
// kernel: tpu_custom_call.1
$region0: #{tpu_custom_call.1}
  #allocation0 [shape = 'u32[]', space=smem, size = 0x4, offset = 0x4, fixed_abs, tag = 'smem constant byte address 0x4 - core index']
  #allocation1 [shape = 'u32[144,128]{1,0:T(1,128)}', space=vmem, size = 0x12000, scoped, tag = 'internal scratch']
  %s0 = inlined_call_operand.hbm [shape: f32[2,4,256], index: 0, kind: input, shape index: {}]
  %s1 = inlined_call_operand.vmem [shape: bf16[3,3,8,4], index: 1, kind: input, shape index: {}]
  %s2 = inlined_call_operand.vmem [shape: f32[8,1], index: 2, kind: input, shape index: {}]
  %s3 = inlined_call_operand.vmem [shape: bf16[3,3,8,8], index: 3, kind: input, shape index: {}]
  %s4 = inlined_call_operand.vmem [shape: f32[8,1], index: 4, kind: input, shape index: {}]
  %s5 = inlined_call_operand.vmem [shape: f32[3,3,1,256], index: 5, kind: input, shape index: {}]
  %s6 = inlined_call_operand.hbm [shape: f32[2,8,256], index: 6, kind: output, shape index: {}]
  %s7 = sld [smem:[#allocation0]]
  $region61: #{tpu_custom_call.1} parent=0
    _
  %s9 = ssub.s32 1, %s7
  %s10 = scalar_select 0, %s9, %s7
  $region1: #{tpu_custom_call.1} parent=0
    #allocation2 [shape = 'u8[8192]{0}', space=vmem, size = 0x2000, scoped, tag = 'input window, operand 0']
    #allocation3 [shape = 's32[2]{0}', space=sflag, size = 0x8, scoped, tag = 'scoped memory for tpu_custom_call.1']
    #allocation4 [shape = 's32[2]{0}', space=sflag, size = 0x8, scoped, tag = 'scoped memory for tpu_custom_call.1']
    #allocation5 [shape = 'u8[16384]{0}', space=vmem, size = 0x4000, scoped, tag = 'output window, operand 0']
    %11 = vsyncpa [#allocation3], 0
    %s12 = scalar_lea.sflag [#allocation3], 1
    %13 = vsyncpa %s12, 0
    %14 = vsyncpa [#allocation4], 0
    %s15 = scalar_lea.sflag [#allocation4], 1
    %16 = vsyncpa %s15, 0
    loop: start=0, step=1, limit=4
    $region2: #{tpu_custom_call.1} parent=1 // loop_pre_header
      _
    $region3: #{tpu_custom_call.1} parent=1 // loop_header
      %s18 = sphi 0, %s22
      %p19 = scmp.ge.s32.totalorder %s18, 4
      %s28 = sphi 0, %s30
      %s31 = sphi 0, %s28
      %s32 = sphi 0, %s31
      %s48 = sphi 0, %s32
      %s52 = sphi 0, %s52
      %s54 = sphi 0, %s52
      %s55 = sphi 0, %s54
      %s69 = sphi 0, %s55
      %s73 = sphi 0, %s73
      %s75 = sphi 0, %s73
      %s76 = sphi 0, %s75
      %s90 = sphi 0, %s76
      %s94 = sphi 0, %s94
      %s96 = sphi 0, %s94
      %s97 = sphi 0, %s96
      %s111 = sphi 0, %s97
      %s115 = sphi 0, %s115
      %s117 = sphi 0, %s115
      %s118 = sphi 0, %s117
      %s132 = sphi 0, %s118
      %s136 = sphi 0, %s136
      %s138 = sphi 0, %s136
      %s139 = sphi 0, %s138
      %s153 = sphi 0, %s139
      %s159 = sphi 0, %s161
      %s162 = sphi 0, %s159
      %s163 = sphi 0, %s162
      %s179 = sphi 0, %s163
    $region4: #{tpu_custom_call.1} parent=1 // loop_header_branch
      %21 = sbr.rel (%p19) target = $region8
    $region5: #{tpu_custom_call.1} parent=1 // loop_body
      %s23 = ssub.s32 %s18, 1
      %s24 = ssub.s32 %s18, 2
      %s25 = sadd.s32 %s18, 1
      %s26 = ssub.s32 %s18, %s25
      %p27 = scmp.eq.s32.totalorder %s26, 0
      %s29 = sadd.s32 %s28, 1
      %s30 = scalar_select %p27, %s28, %s29
      %p33 = pneg %p27
      %p34 = scmp.eq.s32.totalorder %s18, 1
      %p35 = por %p33, %p34
      %p36 = scmp.ne.s32.totalorder %s28, %s31
      %p37 = scmp.eq.s32.totalorder %s18, 0
      %p38 = por %p36, %p37
      %p39 = scmp.ne.s32.totalorder %s28, %s31
      %p40 = scmp.eq.s32.totalorder %s23, 1
      %p41 = por %p39, %p40
      %p42 = scmp.ne.s32.totalorder %s31, %s32
      %p43 = scmp.eq.s32.totalorder %s23, 0
      %p44 = por %p42, %p43
      %p45 = scmp.ne.s32.totalorder %s31, %s32
      %p46 = scmp.eq.s32.totalorder %s24, 1
      %p47 = por %p45, %p46
      %p49 = scmp.ne.s32.totalorder %s32, %s48
      %p50 = scmp.eq.s32.totalorder %s24, 0
      %p51 = por %p49, %p50
      %s53 = sadd.s32 %s52, 1
      %p56 = scmp.eq.s32.totalorder %s18, 1
      %p57 = scmp.ne.s32.totalorder %s52, %s54
      %p58 = scmp.eq.s32.totalorder %s18, 0
      %p59 = por %p57, %p58
      %p60 = scmp.ne.s32.totalorder %s52, %s54
      %p61 = scmp.eq.s32.totalorder %s23, 1
      %p62 = por %p60, %p61
      %p63 = scmp.ne.s32.totalorder %s54, %s55
      %p64 = scmp.eq.s32.totalorder %s23, 0
      %p65 = por %p63, %p64
      %p66 = scmp.ne.s32.totalorder %s54, %s55
      %p67 = scmp.eq.s32.totalorder %s24, 1
      %p68 = por %p66, %p67
      %p70 = scmp.ne.s32.totalorder %s55, %s69
      %p71 = scmp.eq.s32.totalorder %s24, 0
      %p72 = por %p70, %p71
      %s74 = sadd.s32 %s73, 1
      %p77 = scmp.eq.s32.totalorder %s18, 1
      %p78 = scmp.ne.s32.totalorder %s73, %s75
      %p79 = scmp.eq.s32.totalorder %s18, 0
      %p80 = por %p78, %p79
      %p81 = scmp.ne.s32.totalorder %s73, %s75
      %p82 = scmp.eq.s32.totalorder %s23, 1
      %p83 = por %p81, %p82
      %p84 = scmp.ne.s32.totalorder %s75, %s76
      %p85 = scmp.eq.s32.totalorder %s23, 0
      %p86 = por %p84, %p85
      %p87 = scmp.ne.s32.totalorder %s75, %s76
      %p88 = scmp.eq.s32.totalorder %s24, 1
      %p89 = por %p87, %p88
      %p91 = scmp.ne.s32.totalorder %s76, %s90
      %p92 = scmp.eq.s32.totalorder %s24, 0
      %p93 = por %p91, %p92
      %s95 = sadd.s32 %s94, 1
      %p98 = scmp.eq.s32.totalorder %s18, 1
      %p99 = scmp.ne.s32.totalorder %s94, %s96
      %p100 = scmp.eq.s32.totalorder %s18, 0
      %p101 = por %p99, %p100
      %p102 = scmp.ne.s32.totalorder %s94, %s96
      %p103 = scmp.eq.s32.totalorder %s23, 1
      %p104 = por %p102, %p103
      %p105 = scmp.ne.s32.totalorder %s96, %s97
      %p106 = scmp.eq.s32.totalorder %s23, 0
      %p107 = por %p105, %p106
      %p108 = scmp.ne.s32.totalorder %s96, %s97
      %p109 = scmp.eq.s32.totalorder %s24, 1
      %p110 = por %p108, %p109
      %p112 = scmp.ne.s32.totalorder %s97, %s111
      %p113 = scmp.eq.s32.totalorder %s24, 0
      %p114 = por %p112, %p113
      %s116 = sadd.s32 %s115, 1
      %p119 = scmp.eq.s32.totalorder %s18, 1
      %p120 = scmp.ne.s32.totalorder %s115, %s117
      %p121 = scmp.eq.s32.totalorder %s18, 0
      %p122 = por %p120, %p121
      %p123 = scmp.ne.s32.totalorder %s115, %s117
      %p124 = scmp.eq.s32.totalorder %s23, 1
      %p125 = por %p123, %p124
      %p126 = scmp.ne.s32.totalorder %s117, %s118
      %p127 = scmp.eq.s32.totalorder %s23, 0
      %p128 = por %p126, %p127
      %p129 = scmp.ne.s32.totalorder %s117, %s118
      %p130 = scmp.eq.s32.totalorder %s24, 1
      %p131 = por %p129, %p130
      %p133 = scmp.ne.s32.totalorder %s118, %s132
      %p134 = scmp.eq.s32.totalorder %s24, 0
      %p135 = por %p133, %p134
      %s137 = sadd.s32 %s136, 1
      %p140 = scmp.eq.s32.totalorder %s18, 1
      %p141 = scmp.ne.s32.totalorder %s136, %s138
      %p142 = scmp.eq.s32.totalorder %s18, 0
      %p143 = por %p141, %p142
      %p144 = scmp.ne.s32.totalorder %s136, %s138
      %p145 = scmp.eq.s32.totalorder %s23, 1
      %p146 = por %p144, %p145
      %p147 = scmp.ne.s32.totalorder %s138, %s139
      %p148 = scmp.eq.s32.totalorder %s23, 0
      %p149 = por %p147, %p148
      %p150 = scmp.ne.s32.totalorder %s138, %s139
      %p151 = scmp.eq.s32.totalorder %s24, 1
      %p152 = por %p150, %p151
      %p154 = scmp.ne.s32.totalorder %s139, %s153
      %p155 = scmp.eq.s32.totalorder %s24, 0
      %p156 = por %p154, %p155
      %s157 = ssub.s32 %s18, %s25
      %p158 = scmp.eq.s32.totalorder %s157, 0
      %s160 = sadd.s32 %s159, 1
      %s161 = scalar_select %p158, %s159, %s160
      %p164 = pneg %p158
      %p165 = scmp.eq.s32.totalorder %s18, 1
      %p166 = por %p164, %p165
      %p167 = scmp.ne.s32.totalorder %s159, %s162
      %p168 = scmp.eq.s32.totalorder %s18, 0
      %p169 = por %p167, %p168
      %p170 = scmp.ne.s32.totalorder %s159, %s162
      %p171 = scmp.eq.s32.totalorder %s23, 1
      %p172 = por %p170, %p171
      %p173 = scmp.ne.s32.totalorder %s162, %s163
      %p174 = scmp.eq.s32.totalorder %s23, 0
      %p175 = por %p173, %p174
      %p176 = scmp.ne.s32.totalorder %s162, %s163
      %p177 = scmp.eq.s32.totalorder %s24, 1
      %p178 = por %p176, %p177
      %p180 = scmp.ne.s32.totalorder %s163, %s179
      %p181 = scmp.eq.s32.totalorder %s24, 0
      %p182 = por %p180, %p181
      %p183 = scmp.le.s32.totalorder 1, %s18
      %p184 = scmp.lt.s32.totalorder %s18, 3
      %p185 = pnand %p183, %p184
      %p186 = pneg %p185
      // Predicated region
      $region9: #{tpu_custom_call.1} parent=5 // pred_check
        _
      $region10: #{tpu_custom_call.1} parent=5 // pred_check_branch
        %188 = sbr.rel (%p185) target = $region12
      $region11: #{tpu_custom_call.1} parent=5 // pred_region
        %s189 = ssub.s32 %s18, 1
        // Predicated region
        $region13: #{tpu_custom_call.1} parent=11 // pred_check
          %p190 = pneg %p65
        $region14: #{tpu_custom_call.1} parent=11 // pred_check_branch
          %192 = sbr.rel (%p190) target = $region16
        $region15: #{tpu_custom_call.1} parent=11 // pred_region
          _
        $region16: #{tpu_custom_call.1} parent=11 // pred_fallthru
          _
        // Predicated region
        $region17: #{tpu_custom_call.1} parent=11 // pred_check
          %p193 = pneg %p86
        $region18: #{tpu_custom_call.1} parent=11 // pred_check_branch
          %195 = sbr.rel (%p193) target = $region20
        $region19: #{tpu_custom_call.1} parent=11 // pred_region
          _
        $region20: #{tpu_custom_call.1} parent=11 // pred_fallthru
          _
        // Predicated region
        $region21: #{tpu_custom_call.1} parent=11 // pred_check
          %p196 = pneg %p107
        $region22: #{tpu_custom_call.1} parent=11 // pred_check_branch
          %198 = sbr.rel (%p196) target = $region24
        $region23: #{tpu_custom_call.1} parent=11 // pred_region
          _
        $region24: #{tpu_custom_call.1} parent=11 // pred_fallthru
          _
        // Predicated region
        $region25: #{tpu_custom_call.1} parent=11 // pred_check
          %p199 = pneg %p128
        $region26: #{tpu_custom_call.1} parent=11 // pred_check_branch
          %201 = sbr.rel (%p199) target = $region28
        $region27: #{tpu_custom_call.1} parent=11 // pred_region
          _
        $region28: #{tpu_custom_call.1} parent=11 // pred_fallthru
          _
        // Predicated region
        $region29: #{tpu_custom_call.1} parent=11 // pred_check
          %p202 = pneg %p149
        $region30: #{tpu_custom_call.1} parent=11 // pred_check_branch
          %204 = sbr.rel (%p202) target = $region32
        $region31: #{tpu_custom_call.1} parent=11 // pred_region
          _
        $region32: #{tpu_custom_call.1} parent=11 // pred_fallthru
          _
      $region12: #{tpu_custom_call.1} parent=5 // pred_fallthru
        _
      %p205 = scmp.lt.s32.totalorder %s18, 2
      // Predicated region
      $region33: #{tpu_custom_call.1} parent=5 // pred_check
        %p206 = pneg %p205
      $region34: #{tpu_custom_call.1} parent=5 // pred_check_branch
        %208 = sbr.rel (%p206) target = $region36
      $region35: #{tpu_custom_call.1} parent=5 // pred_region
        // Predicated region
        $region37: #{tpu_custom_call.1} parent=35 // pred_check
          %p209 = pneg %p38
        $region38: #{tpu_custom_call.1} parent=35 // pred_check_branch
          %211 = sbr.rel (%p209) target = $region40
        $region39: #{tpu_custom_call.1} parent=35 // pred_region
          %s212 = sand.u32 %s28, 1
          %s213 = scalar_lea.sflag [#allocation3], %s212
          %s214 = sand.u32 %s28, 1
          %s215 = smul.addr %s214, 8
          %s216 = scalar_lea.vmem [#allocation2], %s215
          %s218 = ssub.s32 128, 128
          %219 = vsyncadd %s213, %s218
          %s220 = smul.addr %s18, 2
          %s221 = smul.addr %s220, 64
          %s222 = scalar_lea.hbm %s0, %s221
          %s224 = sshll.u32 %s216, 4
          %s225 = int_to_ptr.vmem [resolvable:$true] %s224
          %227 = dma.hbm_to_vmem [thread:$0]  %s222, 128, %s225, %s213
        $region40: #{tpu_custom_call.1} parent=35 // pred_fallthru
          _
      $region36: #{tpu_custom_call.1} parent=5 // pred_fallthru
        _
      %p228 = scmp.le.s32.totalorder 1, %s18
      %p229 = scmp.lt.s32.totalorder %s18, 3
      %p230 = pnand %p228, %p229
      %p231 = pneg %p230
      // Predicated region
      $region41: #{tpu_custom_call.1} parent=5 // pred_check
        _
      $region42: #{tpu_custom_call.1} parent=5 // pred_check_branch
        %233 = sbr.rel (%p230) target = $region44
      $region43: #{tpu_custom_call.1} parent=5 // pred_region
        %s234 = ssub.s32 %s18, 1
        %s235 = sand.u32 %s31, 1
        %s236 = scalar_lea.sflag [#allocation3], %s235
        %s237 = sand.u32 %s31, 1
        %s238 = smul.addr %s237, 8
        %s239 = scalar_lea.vmem [#allocation2], %s238
        // Predicated region
        $region45: #{tpu_custom_call.1} parent=43 // pred_check
          %p240 = pneg %p44
        $region46: #{tpu_custom_call.1} parent=43 // pred_check_branch
          %242 = sbr.rel (%p240) target = $region48
        $region47: #{tpu_custom_call.1} parent=43 // pred_region
          %243 = dma.done %s236, 128
        $region48: #{tpu_custom_call.1} parent=43 // pred_fallthru
          _
        %s244 = sand.u32 %s31, 1
        %s245 = scalar_lea.sflag [#allocation3], %s244
        %s246 = sand.u32 %s31, 1
        %s247 = smul.addr %s246, 8
        %s248 = scalar_lea.vmem [#allocation2], %s247
        %p249 = pneg %p44
        %p250 = pneg %p41
        %p251 = pneg %p65
        %p252 = pneg %p62
        %p253 = pneg %p86
        %p254 = pneg %p83
        %p255 = pneg %p107
        %p256 = pneg %p104
        %p257 = pneg %p128
        %p258 = pneg %p125
        %p259 = pneg %p149
        %p260 = pneg %p146
        %p261 = pneg %p175
        %p262 = pneg %p172
        %s263 = sand.u32 %s162, 1
        %s264 = scalar_lea.sflag [#allocation4], %s263
        %s265 = sand.u32 %s162, 1
        %s266 = smul.addr %s265, 16
        %s267 = scalar_lea.vmem [#allocation5], %s266
        %v269 = vld [vmem:[%s239] sm:$0xff]
        %v271 = vcombine.high %v269, %v269
        %272 = vrot.lane.b32.xlu0 %v271, 17
        %v273 = vpop.permute.xlu0 %272
        %275 = vrot.lane.b32.xlu0 %v269, 17
        %v276 = vpop.permute.xlu0 %275
        %vm277 = vcmask 138240
        %v278 = vsel %vm277, %v276, %v273
        %v281 = vsel %vm277, %v273, %v276
        %v282 = vld [vmem:[%s5] sm:$0x3]
        %v284 = vlaneseq
        %v285 = vshrl.u32 %v284, 7
        %v286 = vsub.s32 0, %v285
        %v287 = vrot.slane %v282, %v286
        %v288 = vlaneseq
        %v289 = vshrl.u32 %v288, 7
        %v290 = vsub.s32 1, %v289
        %v291 = vrot.slane %v282, %v290
        %v294 = vmul.f32 %v281, %v287
        %v295 = vmul.f32 %v278, %v291
        %v296 = vld [vmem:[%s1] sm:$0xf]
        %v297 = vpack.c.bf16 %v294, %v294
        %v298 = vpack.c.bf16 %v295, %v295
        %299 = vrot.lane.b32.xlu0 %v271, 16
        %v300 = vpop.permute.xlu0 %299
        %302 = vrot.lane.b32.xlu0 %v269, 16
        %v303 = vpop.permute.xlu0 %302
        %vm304 = vcmask 130048
        %v305 = vsel %vm304, %v303, %v300
        %v308 = vsel %vm304, %v300, %v303
        %s309 = scalar_lea.vmem %s5, 2
        %v310 = vld [vmem:[%s309] sm:$0x3]
        %v312 = vlaneseq
        %v313 = vshrl.u32 %v312, 7
        %v314 = vsub.s32 0, %v313
        %v315 = vrot.slane %v310, %v314
        %v316 = vlaneseq
        %v317 = vshrl.u32 %v316, 7
        %v318 = vsub.s32 1, %v317
        %v319 = vrot.slane %v310, %v318
        %v322 = vmul.f32 %v308, %v315
        %v323 = vmul.f32 %v305, %v319
        %s324 = scalar_lea.vmem %s1, 4
        %v325 = vld [vmem:[%s324] sm:$0xf]
        %v326 = vpack.c.bf16 %v322, %v322
        %v327 = vpack.c.bf16 %v323, %v323
        %vm328 = vcmask 31744
        %v330 = vsel %vm328, %v325, 0
        %vm332 = vcmask 1041408
        %v334 = vsel %vm332, %v326, 0
        %v337 = vsel %vm332, %v327, 0
        %339 = vmatprep.subr.bf16.mxu0 %v337
        %340 = vmatpush1.bf16.msra.mxu0 %v334
        %341 = vmatprep.subr.bf16.mxu0 0
        %342 = vmatpush1.bf16.msra.mxu0 0
        %343 = vmatprep.subr.bf16.mxu0 0
        %344 = vmatpush1.bf16.msra.mxu0 0
        %345 = vmatprep.subr.bf16.mxu0 0
        %346 = vmatpush1.bf16.msra.mxu0 0
        %347 = vmatprep.subr.bf16.mxu0 0
        %348 = vmatpush1.bf16.msra.mxu0 0
        %349 = vmatprep.subr.bf16.mxu0 0
        %350 = vmatpush1.bf16.msra.mxu0 0
        %351 = vmatprep.subr.bf16.mxu0 0
        %352 = vmatpush1.bf16.msra.mxu0 0
        %353 = vmatprep.subr.bf16.mxu0 0
        %354 = vmatpush1.bf16.msra.mxu0 0
        %355 = vmatprep.subr.bf16.mxu0 0
        %356 = vmatpush1.bf16.msra.mxu0 0
        %357 = vmatprep.subr.bf16.mxu0 0
        %358 = vmatpush1.bf16.msra.mxu0 0
        %359 = vmatprep.subr.bf16.mxu0 0
        %360 = vmatpush1.bf16.msra.mxu0 0
        %361 = vmatprep.subr.bf16.mxu0 0
        %362 = vmatpush1.bf16.msra.mxu0 0
        %363 = vmatprep.subr.bf16.mxu0 0
        %364 = vmatpush1.bf16.msra.mxu0 0
        %365 = vmatprep.subr.bf16.mxu0 0
        %366 = vmatpush1.bf16.msra.mxu0 0
        %367 = vmatprep.subr.bf16.mxu0 0
        %368 = vmatpush1.bf16.msra.mxu0 0
        %369 = vmatprep.subr.bf16.mxu0 0
        %370 = vmatpush1.bf16.msra.mxu0 0
        %371 = vmatprep.mubr.bf16.mxu0 0
        %372 = vmatmul.mubr.bf16.gmra.mrb[0].mxu0 %v330
        %v373 = vpop.f32.mrb[0].mxu0
        %v374 = vadd.f32 0.0, %v373
        %v375 = vpop.f32.mrb[0].mxu0
        %v376 = vadd.f32 0.0, %v375
        %v377 = vpop.f32.mrb[0].mxu0
        %v378 = vpop.f32.mrb[0].mxu0
        %379 = vdwg.mxu0
        %v381 = vsel %vm328, %v296, 0
        %v384 = vsel %vm332, %v297, 0
        %v387 = vsel %vm332, %v298, 0
        %389 = vmatprep.subr.bf16.mxu0 %v387
        %390 = vmatpush1.bf16.msra.mxu0 %v384
        %391 = vmatprep.subr.bf16.mxu0 0
        %392 = vmatpush1.bf16.msra.mxu0 0
        %393 = vmatprep.subr.bf16.mxu0 0
        %394 = vmatpush1.bf16.msra.mxu0 0
        %395 = vmatprep.subr.bf16.mxu0 0
        %396 = vmatpush1.bf16.msra.mxu0 0
        %397 = vmatprep.subr.bf16.mxu0 0
        %398 = vmatpush1.bf16.msra.mxu0 0
        %399 = vmatprep.subr.bf16.mxu0 0
        %400 = vmatpush1.bf16.msra.mxu0 0
        %401 = vmatprep.subr.bf16.mxu0 0
        %402 = vmatpush1.bf16.msra.mxu0 0
        %403 = vmatprep.subr.bf16.mxu0 0
        %404 = vmatpush1.bf16.msra.mxu0 0
        %405 = vmatprep.subr.bf16.mxu0 0
        %406 = vmatpush1.bf16.msra.mxu0 0
        %407 = vmatprep.subr.bf16.mxu0 0
        %408 = vmatpush1.bf16.msra.mxu0 0
        %409 = vmatprep.subr.bf16.mxu0 0
        %410 = vmatpush1.bf16.msra.mxu0 0
        %411 = vmatprep.subr.bf16.mxu0 0
        %412 = vmatpush1.bf16.msra.mxu0 0
        %413 = vmatprep.subr.bf16.mxu0 0
        %414 = vmatpush1.bf16.msra.mxu0 0
        %415 = vmatprep.subr.bf16.mxu0 0
        %416 = vmatpush1.bf16.msra.mxu0 0
        %417 = vmatprep.subr.bf16.mxu0 0
        %418 = vmatpush1.bf16.msra.mxu0 0
        %419 = vmatprep.subr.bf16.mxu0 0
        %420 = vmatpush1.bf16.msra.mxu0 0
        %421 = vmatprep.mubr.bf16.mxu0 0
        %422 = vmatmul.mubr.bf16.gmra.mrb[0].mxu0 %v381
        %v423 = vpop.f32.mrb[0].mxu0
        %v424 = vadd.f32 %v374, %v423
        %v425 = vpop.f32.mrb[0].mxu0
        %v426 = vadd.f32 %v376, %v425
        %v427 = vpop.f32.mrb[0].mxu0
        %v428 = vpop.f32.mrb[0].mxu0
        %429 = vdwg.mxu0
        %430 = vrot.lane.b32.xlu0 %v271, 15
        %v431 = vpop.permute.xlu0 %430
        %433 = vrot.lane.b32.xlu0 %v269, 15
        %v434 = vpop.permute.xlu0 %433
        %vm435 = vcmask 121856
        %v436 = vsel %vm435, %v434, %v431
        %v439 = vsel %vm435, %v431, %v434
        %s440 = scalar_lea.vmem %s5, 4
        %v441 = vld [vmem:[%s440] sm:$0x3]
        %v443 = vlaneseq
        %v444 = vshrl.u32 %v443, 7
        %v445 = vsub.s32 0, %v444
        %v446 = vrot.slane %v441, %v445
        %v447 = vlaneseq
        %v448 = vshrl.u32 %v447, 7
        %v449 = vsub.s32 1, %v448
        %v450 = vrot.slane %v441, %v449
        %v453 = vmul.f32 %v439, %v446
        %v454 = vmul.f32 %v436, %v450
        %s455 = scalar_lea.vmem %s1, 8
        %v456 = vld [vmem:[%s455] sm:$0xf]
        %v457 = vpack.c.bf16 %v453, %v453
        %v458 = vpack.c.bf16 %v454, %v454
        %v460 = vsel %vm328, %v456, 0
        %v463 = vsel %vm332, %v457, 0
        %v466 = vsel %vm332, %v458, 0
        %468 = vmatprep.subr.bf16.mxu0 %v466
        %469 = vmatpush1.bf16.msra.mxu0 %v463
        %470 = vmatprep.subr.bf16.mxu0 0
        %471 = vmatpush1.bf16.msra.mxu0 0
        %472 = vmatprep.subr.bf16.mxu0 0
        %473 = vmatpush1.bf16.msra.mxu0 0
        %474 = vmatprep.subr.bf16.mxu0 0
        %475 = vmatpush1.bf16.msra.mxu0 0
        %476 = vmatprep.subr.bf16.mxu0 0
        %477 = vmatpush1.bf16.msra.mxu0 0
        %478 = vmatprep.subr.bf16.mxu0 0
        %479 = vmatpush1.bf16.msra.mxu0 0
        %480 = vmatprep.subr.bf16.mxu0 0
        %481 = vmatpush1.bf16.msra.mxu0 0
        %482 = vmatprep.subr.bf16.mxu0 0
        %483 = vmatpush1.bf16.msra.mxu0 0
        %484 = vmatprep.subr.bf16.mxu0 0
        %485 = vmatpush1.bf16.msra.mxu0 0
        %486 = vmatprep.subr.bf16.mxu0 0
        %487 = vmatpush1.bf16.msra.mxu0 0
        %488 = vmatprep.subr.bf16.mxu0 0
        %489 = vmatpush1.bf16.msra.mxu0 0
        %490 = vmatprep.subr.bf16.mxu0 0
        %491 = vmatpush1.bf16.msra.mxu0 0
        %492 = vmatprep.subr.bf16.mxu0 0
        %493 = vmatpush1.bf16.msra.mxu0 0
        %494 = vmatprep.subr.bf16.mxu0 0
        %495 = vmatpush1.bf16.msra.mxu0 0
        %496 = vmatprep.subr.bf16.mxu0 0
        %497 = vmatpush1.bf16.msra.mxu0 0
        %498 = vmatprep.subr.bf16.mxu0 0
        %499 = vmatpush1.bf16.msra.mxu0 0
        %500 = vmatprep.mubr.bf16.mxu0 0
        %501 = vmatmul.mubr.bf16.gmra.mrb[0].mxu0 %v460
        %v502 = vpop.f32.mrb[0].mxu0
        %v503 = vadd.f32 0.0, %v502
        %v504 = vpop.f32.mrb[0].mxu0
        %v505 = vadd.f32 0.0, %v504
        %v506 = vpop.f32.mrb[0].mxu0
        %v507 = vpop.f32.mrb[0].mxu0
        %508 = vdwg.mxu0
        %v509 = vadd.f32 %v424, %v503
        %v510 = vadd.f32 %v426, %v505
        %511 = vrot.lane.b32.xlu0 %v271, 1
        %v512 = vpop.permute.xlu0 %511
        %514 = vrot.lane.b32.xlu0 %v269, 1
        %v515 = vpop.permute.xlu0 %514
        %vm516 = vcmask 7168
        %v517 = vsel %vm516, %v515, %v512
        %v520 = vsel %vm516, %v512, %v515
        %s521 = scalar_lea.vmem %s5, 6
        %v522 = vld [vmem:[%s521] sm:$0x3]
        %v524 = vlaneseq
        %v525 = vshrl.u32 %v524, 7
        %v526 = vsub.s32 0, %v525
        %v527 = vrot.slane %v522, %v526
        %v528 = vlaneseq
        %v529 = vshrl.u32 %v528, 7
        %v530 = vsub.s32 1, %v529
        %v531 = vrot.slane %v522, %v530
        %v534 = vmul.f32 %v520, %v527
        %v535 = vmul.f32 %v517, %v531
        %s536 = scalar_lea.vmem %s1, 12
        %v537 = vld [vmem:[%s536] sm:$0xf]
        %v538 = vpack.c.bf16 %v534, %v534
        %v539 = vpack.c.bf16 %v535, %v535
        %v541 = vsel %vm328, %v537, 0
        %v544 = vsel %vm332, %v538, 0
        %v547 = vsel %vm332, %v539, 0
        %549 = vmatprep.subr.bf16.mxu0 %v547
        %550 = vmatpush1.bf16.msra.mxu0 %v544
        %551 = vmatprep.subr.bf16.mxu0 0
        %552 = vmatpush1.bf16.msra.mxu0 0
        %553 = vmatprep.subr.bf16.mxu0 0
        %554 = vmatpush1.bf16.msra.mxu0 0
        %555 = vmatprep.subr.bf16.mxu0 0
        %556 = vmatpush1.bf16.msra.mxu0 0
        %557 = vmatprep.subr.bf16.mxu0 0
        %558 = vmatpush1.bf16.msra.mxu0 0
        %559 = vmatprep.subr.bf16.mxu0 0
        %560 = vmatpush1.bf16.msra.mxu0 0
        %561 = vmatprep.subr.bf16.mxu0 0
        %562 = vmatpush1.bf16.msra.mxu0 0
        %563 = vmatprep.subr.bf16.mxu0 0
        %564 = vmatpush1.bf16.msra.mxu0 0
        %565 = vmatprep.subr.bf16.mxu0 0
        %566 = vmatpush1.bf16.msra.mxu0 0
        %567 = vmatprep.subr.bf16.mxu0 0
        %568 = vmatpush1.bf16.msra.mxu0 0
        %569 = vmatprep.subr.bf16.mxu0 0
        %570 = vmatpush1.bf16.msra.mxu0 0
        %571 = vmatprep.subr.bf16.mxu0 0
        %572 = vmatpush1.bf16.msra.mxu0 0
        %573 = vmatprep.subr.bf16.mxu0 0
        %574 = vmatpush1.bf16.msra.mxu0 0
        %575 = vmatprep.subr.bf16.mxu0 0
        %576 = vmatpush1.bf16.msra.mxu0 0
        %577 = vmatprep.subr.bf16.mxu0 0
        %578 = vmatpush1.bf16.msra.mxu0 0
        %579 = vmatprep.subr.bf16.mxu0 0
        %580 = vmatpush1.bf16.msra.mxu0 0
        %581 = vmatprep.mubr.bf16.mxu0 0
        %582 = vmatmul.mubr.bf16.gmra.mrb[0].mxu0 %v541
        %v583 = vpop.f32.mrb[0].mxu0
        %v584 = vadd.f32 0.0, %v583
        %v585 = vpop.f32.mrb[0].mxu0
        %v586 = vadd.f32 0.0, %v585
        %v587 = vpop.f32.mrb[0].mxu0
        %v588 = vpop.f32.mrb[0].mxu0
        %589 = vdwg.mxu0
        %v590 = vadd.f32 %v509, %v584
        %v591 = vadd.f32 %v510, %v586
        %s592 = scalar_lea.vmem %s1, 16
        %v593 = vld [vmem:[%s592] sm:$0xf]
        %v595 = vpack.c.bf16 %v269, %v269
        %v596 = vpack.c.bf16 %v271, %v271
        %v598 = vsel %vm328, %v593, 0
        %v601 = vsel %vm332, %v595, 0
        %v604 = vsel %vm332, %v596, 0
        %606 = vmatprep.subr.bf16.mxu0 %v604
        %607 = vmatpush1.bf16.msra.mxu0 %v601
        %608 = vmatprep.subr.bf16.mxu0 0
        %609 = vmatpush1.bf16.msra.mxu0 0
        %610 = vmatprep.subr.bf16.mxu0 0
        %611 = vmatpush1.bf16.msra.mxu0 0
        %612 = vmatprep.subr.bf16.mxu0 0
        %613 = vmatpush1.bf16.msra.mxu0 0
        %614 = vmatprep.subr.bf16.mxu0 0
        %615 = vmatpush1.bf16.msra.mxu0 0
        %616 = vmatprep.subr.bf16.mxu0 0
        %617 = vmatpush1.bf16.msra.mxu0 0
        %618 = vmatprep.subr.bf16.mxu0 0
        %619 = vmatpush1.bf16.msra.mxu0 0
        %620 = vmatprep.subr.bf16.mxu0 0
        %621 = vmatpush1.bf16.msra.mxu0 0
        %622 = vmatprep.subr.bf16.mxu0 0
        %623 = vmatpush1.bf16.msra.mxu0 0
        %624 = vmatprep.subr.bf16.mxu0 0
        %625 = vmatpush1.bf16.msra.mxu0 0
        %626 = vmatprep.subr.bf16.mxu0 0
        %627 = vmatpush1.bf16.msra.mxu0 0
        %628 = vmatprep.subr.bf16.mxu0 0
        %629 = vmatpush1.bf16.msra.mxu0 0
        %630 = vmatprep.subr.bf16.mxu0 0
        %631 = vmatpush1.bf16.msra.mxu0 0
        %632 = vmatprep.subr.bf16.mxu0 0
        %633 = vmatpush1.bf16.msra.mxu0 0
        %634 = vmatprep.subr.bf16.mxu0 0
        %635 = vmatpush1.bf16.msra.mxu0 0
        %636 = vmatprep.subr.bf16.mxu0 0
        %637 = vmatpush1.bf16.msra.mxu0 0
        %638 = vmatprep.mubr.bf16.mxu0 0
        %639 = vmatmul.mubr.bf16.gmra.mrb[0].mxu0 %v598
        %v640 = vpop.f32.mrb[0].mxu0
        %v641 = vadd.f32 0.0, %v640
        %v642 = vpop.f32.mrb[0].mxu0
        %v643 = vadd.f32 0.0, %v642
        %v644 = vpop.f32.mrb[0].mxu0
        %v645 = vpop.f32.mrb[0].mxu0
        %646 = vdwg.mxu0
        %v647 = vadd.f32 %v590, %v641
        %v648 = vadd.f32 %v591, %v643
        %649 = vrot.lane.b32.xlu0 %v269, 127
        %v650 = vpop.permute.xlu0 %649
        %651 = vrot.lane.b32.xlu0 %v271, 127
        %v652 = vpop.permute.xlu0 %651
        %vm653 = vcmask 1039360
        %v654 = vsel %vm653, %v650, %v652
        %v658 = vsel %vm653, %v652, %v650
        %s659 = scalar_lea.vmem %s5, 10
        %v660 = vld [vmem:[%s659] sm:$0x3]
        %v662 = vlaneseq
        %v663 = vshrl.u32 %v662, 7
        %v664 = vsub.s32 0, %v663
        %v665 = vrot.slane %v660, %v664
        %v666 = vlaneseq
        %v667 = vshrl.u32 %v666, 7
        %v668 = vsub.s32 1, %v667
        %v669 = vrot.slane %v660, %v668
        %v672 = vmul.f32 %v654, %v665
        %v673 = vmul.f32 %v658, %v669
        %s674 = scalar_lea.vmem %s1, 20
        %v675 = vld [vmem:[%s674] sm:$0xf]
        %v676 = vpack.c.bf16 %v672, %v672
        %v677 = vpack.c.bf16 %v673, %v673
        %v679 = vsel %vm328, %v675, 0
        %v682 = vsel %vm332, %v676, 0
        %v685 = vsel %vm332, %v677, 0
        %687 = vmatprep.subr.bf16.mxu0 %v685
        %688 = vmatpush1.bf16.msra.mxu0 %v682
        %689 = vmatprep.subr.bf16.mxu0 0
        %690 = vmatpush1.bf16.msra.mxu0 0
        %691 = vmatprep.subr.bf16.mxu0 0
        %692 = vmatpush1.bf16.msra.mxu0 0
        %693 = vmatprep.subr.bf16.mxu0 0
        %694 = vmatpush1.bf16.msra.mxu0 0
        %695 = vmatprep.subr.bf16.mxu0 0
        %696 = vmatpush1.bf16.msra.mxu0 0
        %697 = vmatprep.subr.bf16.mxu0 0
        %698 = vmatpush1.bf16.msra.mxu0 0
        %699 = vmatprep.subr.bf16.mxu0 0
        %700 = vmatpush1.bf16.msra.mxu0 0
        %701 = vmatprep.subr.bf16.mxu0 0
        %702 = vmatpush1.bf16.msra.mxu0 0
        %703 = vmatprep.subr.bf16.mxu0 0
        %704 = vmatpush1.bf16.msra.mxu0 0
        %705 = vmatprep.subr.bf16.mxu0 0
        %706 = vmatpush1.bf16.msra.mxu0 0
        %707 = vmatprep.subr.bf16.mxu0 0
        %708 = vmatpush1.bf16.msra.mxu0 0
        %709 = vmatprep.subr.bf16.mxu0 0
        %710 = vmatpush1.bf16.msra.mxu0 0
        %711 = vmatprep.subr.bf16.mxu0 0
        %712 = vmatpush1.bf16.msra.mxu0 0
        %713 = vmatprep.subr.bf16.mxu0 0
        %714 = vmatpush1.bf16.msra.mxu0 0
        %715 = vmatprep.subr.bf16.mxu0 0
        %716 = vmatpush1.bf16.msra.mxu0 0
        %717 = vmatprep.subr.bf16.mxu0 0
        %718 = vmatpush1.bf16.msra.mxu0 0
        %719 = vmatprep.mubr.bf16.mxu0 0
        %720 = vmatmul.mubr.bf16.gmra.mrb[0].mxu0 %v679
        %v721 = vpop.f32.mrb[0].mxu0
        %v722 = vadd.f32 0.0, %v721
        %v723 = vpop.f32.mrb[0].mxu0
        %v724 = vadd.f32 0.0, %v723
        %v725 = vpop.f32.mrb[0].mxu0
        %v726 = vpop.f32.mrb[0].mxu0
        %727 = vdwg.mxu0
        %v728 = vadd.f32 %v647, %v722
        %v729 = vadd.f32 %v648, %v724
        %730 = vrot.lane.b32.xlu0 %v269, 113
        %v731 = vpop.permute.xlu0 %730
        %732 = vrot.lane.b32.xlu0 %v271, 113
        %v733 = vpop.permute.xlu0 %732
        %vm734 = vcmask 924672
        %v735 = vsel %vm734, %v731, %v733
        %v739 = vsel %vm734, %v733, %v731
        %s740 = scalar_lea.vmem %s5, 12
        %v741 = vld [vmem:[%s740] sm:$0x3]
        %v743 = vlaneseq
        %v744 = vshrl.u32 %v743, 7
        %v745 = vsub.s32 0, %v744
        %v746 = vrot.slane %v741, %v745
        %v747 = vlaneseq
        %v748 = vshrl.u32 %v747, 7
        %v749 = vsub.s32 1, %v748
        %v750 = vrot.slane %v741, %v749
        %v753 = vmul.f32 %v735, %v746
        %v754 = vmul.f32 %v739, %v750
        %s755 = scalar_lea.vmem %s1, 24
        %v756 = vld [vmem:[%s755] sm:$0xf]
        %v757 = vpack.c.bf16 %v753, %v753
        %v758 = vpack.c.bf16 %v754, %v754
        %v760 = vsel %vm328, %v756, 0
        %v763 = vsel %vm332, %v757, 0
        %v766 = vsel %vm332, %v758, 0
        %768 = vmatprep.subr.bf16.mxu0 %v766
        %769 = vmatpush1.bf16.msra.mxu0 %v763
        %770 = vmatprep.subr.bf16.mxu0 0
        %771 = vmatpush1.bf16.msra.mxu0 0
        %772 = vmatprep.subr.bf16.mxu0 0
        %773 = vmatpush1.bf16.msra.mxu0 0
        %774 = vmatprep.subr.bf16.mxu0 0
        %775 = vmatpush1.bf16.msra.mxu0 0
        %776 = vmatprep.subr.bf16.mxu0 0
        %777 = vmatpush1.bf16.msra.mxu0 0
        %778 = vmatprep.subr.bf16.mxu0 0
        %779 = vmatpush1.bf16.msra.mxu0 0
        %780 = vmatprep.subr.bf16.mxu0 0
        %781 = vmatpush1.bf16.msra.mxu0 0
        %782 = vmatprep.subr.bf16.mxu0 0
        %783 = vmatpush1.bf16.msra.mxu0 0
        %784 = vmatprep.subr.bf16.mxu0 0
        %785 = vmatpush1.bf16.msra.mxu0 0
        %786 = vmatprep.subr.bf16.mxu0 0
        %787 = vmatpush1.bf16.msra.mxu0 0
        %788 = vmatprep.subr.bf16.mxu0 0
        %789 = vmatpush1.bf16.msra.mxu0 0
        %790 = vmatprep.subr.bf16.mxu0 0
        %791 = vmatpush1.bf16.msra.mxu0 0
        %792 = vmatprep.subr.bf16.mxu0 0
        %793 = vmatpush1.bf16.msra.mxu0 0
        %794 = vmatprep.subr.bf16.mxu0 0
        %795 = vmatpush1.bf16.msra.mxu0 0
        %796 = vmatprep.subr.bf16.mxu0 0
        %797 = vmatpush1.bf16.msra.mxu0 0
        %798 = vmatprep.subr.bf16.mxu0 0
        %799 = vmatpush1.bf16.msra.mxu0 0
        %800 = vmatprep.mubr.bf16.mxu0 0
        %801 = vmatmul.mubr.bf16.gmra.mrb[0].mxu0 %v760
        %v802 = vpop.f32.mrb[0].mxu0
        %v803 = vadd.f32 0.0, %v802
        %v804 = vpop.f32.mrb[0].mxu0
        %v805 = vadd.f32 0.0, %v804
        %v806 = vpop.f32.mrb[0].mxu0
        %v807 = vpop.f32.mrb[0].mxu0
        %808 = vdwg.mxu0
        %v809 = vadd.f32 %v728, %v803
        %v810 = vadd.f32 %v729, %v805
        %811 = vrot.lane.b32.xlu0 %v269, 112
        %v812 = vpop.permute.xlu0 %811
        %813 = vrot.lane.b32.xlu0 %v271, 112
        %v814 = vpop.permute.xlu0 %813
        %vm815 = vcmask 916480
        %v816 = vsel %vm815, %v812, %v814
        %v820 = vsel %vm815, %v814, %v812
        %s821 = scalar_lea.vmem %s5, 14
        %v822 = vld [vmem:[%s821] sm:$0x3]
        %v824 = vlaneseq
        %v825 = vshrl.u32 %v824, 7
        %v826 = vsub.s32 0, %v825
        %v827 = vrot.slane %v822, %v826
        %v828 = vlaneseq
        %v829 = vshrl.u32 %v828, 7
        %v830 = vsub.s32 1, %v829
        %v831 = vrot.slane %v822, %v830
        %v834 = vmul.f32 %v816, %v827
        %v835 = vmul.f32 %v820, %v831
        %s836 = scalar_lea.vmem %s1, 28
        %v837 = vld [vmem:[%s836] sm:$0xf]
        %v838 = vpack.c.bf16 %v834, %v834
        %v839 = vpack.c.bf16 %v835, %v835
        %v841 = vsel %vm328, %v837, 0
        %v844 = vsel %vm332, %v838, 0
        %v847 = vsel %vm332, %v839, 0
        %849 = vmatprep.subr.bf16.mxu0 %v847
        %850 = vmatpush1.bf16.msra.mxu0 %v844
        %851 = vmatprep.subr.bf16.mxu0 0
        %852 = vmatpush1.bf16.msra.mxu0 0
        %853 = vmatprep.subr.bf16.mxu0 0
        %854 = vmatpush1.bf16.msra.mxu0 0
        %855 = vmatprep.subr.bf16.mxu0 0
        %856 = vmatpush1.bf16.msra.mxu0 0
        %857 = vmatprep.subr.bf16.mxu0 0
        %858 = vmatpush1.bf16.msra.mxu0 0
        %859 = vmatprep.subr.bf16.mxu0 0
        %860 = vmatpush1.bf16.msra.mxu0 0
        %861 = vmatprep.subr.bf16.mxu0 0
        %862 = vmatpush1.bf16.msra.mxu0 0
        %863 = vmatprep.subr.bf16.mxu0 0
        %864 = vmatpush1.bf16.msra.mxu0 0
        %865 = vmatprep.subr.bf16.mxu0 0
        %866 = vmatpush1.bf16.msra.mxu0 0
        %867 = vmatprep.subr.bf16.mxu0 0
        %868 = vmatpush1.bf16.msra.mxu0 0
        %869 = vmatprep.subr.bf16.mxu0 0
        %870 = vmatpush1.bf16.msra.mxu0 0
        %871 = vmatprep.subr.bf16.mxu0 0
        %872 = vmatpush1.bf16.msra.mxu0 0
        %873 = vmatprep.subr.bf16.mxu0 0
        %874 = vmatpush1.bf16.msra.mxu0 0
        %875 = vmatprep.subr.bf16.mxu0 0
        %876 = vmatpush1.bf16.msra.mxu0 0
        %877 = vmatprep.subr.bf16.mxu0 0
        %878 = vmatpush1.bf16.msra.mxu0 0
        %879 = vmatprep.subr.bf16.mxu0 0
        %880 = vmatpush1.bf16.msra.mxu0 0
        %881 = vmatprep.mubr.bf16.mxu0 0
        %882 = vmatmul.mubr.bf16.gmra.mrb[0].mxu0 %v841
        %v883 = vpop.f32.mrb[0].mxu0
        %v884 = vadd.f32 0.0, %v883
        %v885 = vpop.f32.mrb[0].mxu0
        %v886 = vadd.f32 0.0, %v885
        %v887 = vpop.f32.mrb[0].mxu0
        %v888 = vpop.f32.mrb[0].mxu0
        %889 = vdwg.mxu0
        %v890 = vadd.f32 %v809, %v884
        %v891 = vadd.f32 %v810, %v886
        %892 = vrot.lane.b32.xlu0 %v269, 111
        %v893 = vpop.permute.xlu0 %892
        %894 = vrot.lane.b32.xlu0 %v271, 111
        %v895 = vpop.permute.xlu0 %894
        %vm896 = vcmask 908288
        %v897 = vsel %vm896, %v893, %v895
        %v901 = vsel %vm896, %v895, %v893
        %s902 = scalar_lea.vmem %s5, 16
        %v903 = vld [vmem:[%s902] sm:$0x3]
        %v905 = vlaneseq
        %v906 = vshrl.u32 %v905, 7
        %v907 = vsub.s32 0, %v906
        %v908 = vrot.slane %v903, %v907
        %v909 = vlaneseq
        %v910 = vshrl.u32 %v909, 7
        %v911 = vsub.s32 1, %v910
        %v912 = vrot.slane %v903, %v911
        %v915 = vmul.f32 %v897, %v908
        %v916 = vmul.f32 %v901, %v912
        %s917 = scalar_lea.vmem %s1, 32
        %v918 = vld [vmem:[%s917] sm:$0xf]
        %v919 = vpack.c.bf16 %v915, %v915
        %v920 = vpack.c.bf16 %v916, %v916
        %v922 = vsel %vm328, %v918, 0
        %v925 = vsel %vm332, %v919, 0
        %v928 = vsel %vm332, %v920, 0
        %930 = vmatprep.subr.bf16.mxu0 %v928
        %931 = vmatpush1.bf16.msra.mxu0 %v925
        %932 = vmatprep.subr.bf16.mxu0 0
        %933 = vmatpush1.bf16.msra.mxu0 0
        %934 = vmatprep.subr.bf16.mxu0 0
        %935 = vmatpush1.bf16.msra.mxu0 0
        %936 = vmatprep.subr.bf16.mxu0 0
        %937 = vmatpush1.bf16.msra.mxu0 0
        %938 = vmatprep.subr.bf16.mxu0 0
        %939 = vmatpush1.bf16.msra.mxu0 0
        %940 = vmatprep.subr.bf16.mxu0 0
        %941 = vmatpush1.bf16.msra.mxu0 0
        %942 = vmatprep.subr.bf16.mxu0 0
        %943 = vmatpush1.bf16.msra.mxu0 0
        %944 = vmatprep.subr.bf16.mxu0 0
        %945 = vmatpush1.bf16.msra.mxu0 0
        %946 = vmatprep.subr.bf16.mxu0 0
        %947 = vmatpush1.bf16.msra.mxu0 0
        %948 = vmatprep.subr.bf16.mxu0 0
        %949 = vmatpush1.bf16.msra.mxu0 0
        %950 = vmatprep.subr.bf16.mxu0 0
        %951 = vmatpush1.bf16.msra.mxu0 0
        %952 = vmatprep.subr.bf16.mxu0 0
        %953 = vmatpush1.bf16.msra.mxu0 0
        %954 = vmatprep.subr.bf16.mxu0 0
        %955 = vmatpush1.bf16.msra.mxu0 0
        %956 = vmatprep.subr.bf16.mxu0 0
        %957 = vmatpush1.bf16.msra.mxu0 0
        %958 = vmatprep.subr.bf16.mxu0 0
        %959 = vmatpush1.bf16.msra.mxu0 0
        %960 = vmatprep.subr.bf16.mxu0 0
        %961 = vmatpush1.bf16.msra.mxu0 0
        %962 = vmatprep.mubr.bf16.mxu0 0
        %963 = vmatmul.mubr.bf16.gmra.mrb[0].mxu0 %v922
        %v964 = vpop.f32.mrb[0].mxu0
        %v965 = vadd.f32 0.0, %v964
        %v966 = vpop.f32.mrb[0].mxu0
        %v967 = vadd.f32 0.0, %v966
        %v968 = vpop.f32.mrb[0].mxu0
        %v969 = vpop.f32.mrb[0].mxu0
        %970 = vdwg.mxu0
        %v971 = vadd.f32 %v890, %v965
        %v972 = vadd.f32 %v891, %v967
        %v973 = vld [vmem:[%s2] sm:$0xff]
        %975 = vset.pattern.permute.xlu0 0
        %976 = vperm.xlu0 %975, %v973
        %v977 = vpop.permute.xlu0 %976
        %v979 = vadd.f32 %v971, %v977
        %v980 = vadd.f32 %v972, %v977
        %vm981 = vcmp.gt.f32.partialorder %v979, 0.0
        %vm982 = vcmp.gt.f32.partialorder %v980, 0.0
        %v983 = vmin.f32 %v979, 0.0
        %v984 = vmin.f32 %v980, 0.0
        %v985 = vmul.f32 %v983, 1.442695
        %v986 = vpow.pop %v985
        %v987 = vmul.f32 %v984, 1.442695
        %v988 = vpow.pop %v987
        %v989 = vsub.f32 %v986, 1.0
        %v990 = vsub.f32 %v988, 1.0
        %v991 = vsel %vm981, %v979, %v989
        %v992 = vsel %vm982, %v980, %v990
        %994 = vrot.lane.b32.xlu0 %v992, 17
        %v995 = vpop.permute.xlu0 %994
        %998 = vrot.lane.b32.xlu0 %v991, 17
        %v999 = vpop.permute.xlu0 %998
        %v1000 = vsel %vm277, %v999, %v995
        %v1003 = vsel %vm277, %v995, %v999
        %v1004 = vmul.f32 %v1003, %v287
        %v1005 = vmul.f32 %v1000, %v291
        %v1006 = vld [vmem:[%s3] sm:$0xf]
        %v1007 = vpack.c.bf16 %v1004, %v1004
        %v1008 = vpack.c.bf16 %v1005, %v1005
        %1009 = vrot.lane.b32.xlu0 %v992, 16
        %v1010 = vpop.permute.xlu0 %1009
        %1012 = vrot.lane.b32.xlu0 %v991, 16
        %v1013 = vpop.permute.xlu0 %1012
        %v1014 = vsel %vm304, %v1013, %v1010
        %v1017 = vsel %vm304, %v1010, %v1013
        %v1018 = vmul.f32 %v1017, %v315
        %v1019 = vmul.f32 %v1014, %v319
        %s1020 = scalar_lea.vmem %s3, 4
        %v1021 = vld [vmem:[%s1020] sm:$0xf]
        %v1022 = vpack.c.bf16 %v1018, %v1018
        %v1023 = vpack.c.bf16 %v1019, %v1019
        %vm1024 = vcmask 64512
        %v1026 = vsel %vm1024, %v1021, 0
        %vm1028 = vcmask 1043456
        %v1030 = vsel %vm1028, %v1022, 0
        %v1033 = vsel %vm1028, %v1023, 0
        %1035 = vmatprep.subr.bf16.mxu0 %v1033
        %1036 = vmatpush1.bf16.msra.mxu0 %v1030
        %1037 = vmatprep.subr.bf16.mxu0 0
        %1038 = vmatpush1.bf16.msra.mxu0 0
        %1039 = vmatprep.subr.bf16.mxu0 0
        %1040 = vmatpush1.bf16.msra.mxu0 0
        %1041 = vmatprep.subr.bf16.mxu0 0
        %1042 = vmatpush1.bf16.msra.mxu0 0
        %1043 = vmatprep.subr.bf16.mxu0 0
        %1044 = vmatpush1.bf16.msra.mxu0 0
        %1045 = vmatprep.subr.bf16.mxu0 0
        %1046 = vmatpush1.bf16.msra.mxu0 0
        %1047 = vmatprep.subr.bf16.mxu0 0
        %1048 = vmatpush1.bf16.msra.mxu0 0
        %1049 = vmatprep.subr.bf16.mxu0 0
        %1050 = vmatpush1.bf16.msra.mxu0 0
        %1051 = vmatprep.subr.bf16.mxu0 0
        %1052 = vmatpush1.bf16.msra.mxu0 0
        %1053 = vmatprep.subr.bf16.mxu0 0
        %1054 = vmatpush1.bf16.msra.mxu0 0
        %1055 = vmatprep.subr.bf16.mxu0 0
        %1056 = vmatpush1.bf16.msra.mxu0 0
        %1057 = vmatprep.subr.bf16.mxu0 0
        %1058 = vmatpush1.bf16.msra.mxu0 0
        %1059 = vmatprep.subr.bf16.mxu0 0
        %1060 = vmatpush1.bf16.msra.mxu0 0
        %1061 = vmatprep.subr.bf16.mxu0 0
        %1062 = vmatpush1.bf16.msra.mxu0 0
        %1063 = vmatprep.subr.bf16.mxu0 0
        %1064 = vmatpush1.bf16.msra.mxu0 0
        %1065 = vmatprep.subr.bf16.mxu0 0
        %1066 = vmatpush1.bf16.msra.mxu0 0
        %1067 = vmatprep.mubr.bf16.mxu0 0
        %1068 = vmatmul.mubr.bf16.gmra.mrb[0].mxu0 %v1026
        %v1069 = vpop.f32.mrb[0].mxu0
        %v1070 = vadd.f32 0.0, %v1069
        %v1071 = vpop.f32.mrb[0].mxu0
        %v1072 = vadd.f32 0.0, %v1071
        %v1073 = vpop.f32.mrb[0].mxu0
        %v1074 = vpop.f32.mrb[0].mxu0
        %1075 = vdwg.mxu0
        %v1077 = vsel %vm1024, %v1006, 0
        %v1080 = vsel %vm1028, %v1007, 0
        %v1083 = vsel %vm1028, %v1008, 0
        %1085 = vmatprep.subr.bf16.mxu0 %v1083
        %1086 = vmatpush1.bf16.msra.mxu0 %v1080
        %1087 = vmatprep.subr.bf16.mxu0 0
        %1088 = vmatpush1.bf16.msra.mxu0 0
        %1089 = vmatprep.subr.bf16.mxu0 0
        %1090 = vmatpush1.bf16.msra.mxu0 0
        %1091 = vmatprep.subr.bf16.mxu0 0
        %1092 = vmatpush1.bf16.msra.mxu0 0
        %1093 = vmatprep.subr.bf16.mxu0 0
        %1094 = vmatpush1.bf16.msra.mxu0 0
        %1095 = vmatprep.subr.bf16.mxu0 0
        %1096 = vmatpush1.bf16.msra.mxu0 0
        %1097 = vmatprep.subr.bf16.mxu0 0
        %1098 = vmatpush1.bf16.msra.mxu0 0
        %1099 = vmatprep.subr.bf16.mxu0 0
        %1100 = vmatpush1.bf16.msra.mxu0 0
        %1101 = vmatprep.subr.bf16.mxu0 0
        %1102 = vmatpush1.bf16.msra.mxu0 0
        %1103 = vmatprep.subr.bf16.mxu0 0
        %1104 = vmatpush1.bf16.msra.mxu0 0
        %1105 = vmatprep.subr.bf16.mxu0 0
        %1106 = vmatpush1.bf16.msra.mxu0 0
        %1107 = vmatprep.subr.bf16.mxu0 0
        %1108 = vmatpush1.bf16.msra.mxu0 0
        %1109 = vmatprep.subr.bf16.mxu0 0
        %1110 = vmatpush1.bf16.msra.mxu0 0
        %1111 = vmatprep.subr.bf16.mxu0 0
        %1112 = vmatpush1.bf16.msra.mxu0 0
        %1113 = vmatprep.subr.bf16.mxu0 0
        %1114 = vmatpush1.bf16.msra.mxu0 0
        %1115 = vmatprep.subr.bf16.mxu0 0
        %1116 = vmatpush1.bf16.msra.mxu0 0
        %1117 = vmatprep.mubr.bf16.mxu0 0
        %1118 = vmatmul.mubr.bf16.gmra.mrb[0].mxu0 %v1077
        %v1119 = vpop.f32.mrb[0].mxu0
        %v1120 = vadd.f32 %v1070, %v1119
        %v1121 = vpop.f32.mrb[0].mxu0
        %v1122 = vadd.f32 %v1072, %v1121
        %v1123 = vpop.f32.mrb[0].mxu0
        %v1124 = vpop.f32.mrb[0].mxu0
        %1125 = vdwg.mxu0
        %1126 = vrot.lane.b32.xlu0 %v992, 15
        %v1127 = vpop.permute.xlu0 %1126
        %1129 = vrot.lane.b32.xlu0 %v991, 15
        %v1130 = vpop.permute.xlu0 %1129
        %v1131 = vsel %vm435, %v1130, %v1127
        %v1134 = vsel %vm435, %v1127, %v1130
        %v1135 = vmul.f32 %v1134, %v446
        %v1136 = vmul.f32 %v1131, %v450
        %s1137 = scalar_lea.vmem %s3, 8
        %v1138 = vld [vmem:[%s1137] sm:$0xf]
        %v1139 = vpack.c.bf16 %v1135, %v1135
        %v1140 = vpack.c.bf16 %v1136, %v1136
        %v1142 = vsel %vm1024, %v1138, 0
        %v1145 = vsel %vm1028, %v1139, 0
        %v1148 = vsel %vm1028, %v1140, 0
        %1150 = vmatprep.subr.bf16.mxu0 %v1148
        %1151 = vmatpush1.bf16.msra.mxu0 %v1145
        %1152 = vmatprep.subr.bf16.mxu0 0
        %1153 = vmatpush1.bf16.msra.mxu0 0
        %1154 = vmatprep.subr.bf16.mxu0 0
        %1155 = vmatpush1.bf16.msra.mxu0 0
        %1156 = vmatprep.subr.bf16.mxu0 0
        %1157 = vmatpush1.bf16.msra.mxu0 0
        %1158 = vmatprep.subr.bf16.mxu0 0
        %1159 = vmatpush1.bf16.msra.mxu0 0
        %1160 = vmatprep.subr.bf16.mxu0 0
        %1161 = vmatpush1.bf16.msra.mxu0 0
        %1162 = vmatprep.subr.bf16.mxu0 0
        %1163 = vmatpush1.bf16.msra.mxu0 0
        %1164 = vmatprep.subr.bf16.mxu0 0
        %1165 = vmatpush1.bf16.msra.mxu0 0
        %1166 = vmatprep.subr.bf16.mxu0 0
        %1167 = vmatpush1.bf16.msra.mxu0 0
        %1168 = vmatprep.subr.bf16.mxu0 0
        %1169 = vmatpush1.bf16.msra.mxu0 0
        %1170 = vmatprep.subr.bf16.mxu0 0
        %1171 = vmatpush1.bf16.msra.mxu0 0
        %1172 = vmatprep.subr.bf16.mxu0 0
        %1173 = vmatpush1.bf16.msra.mxu0 0
        %1174 = vmatprep.subr.bf16.mxu0 0
        %1175 = vmatpush1.bf16.msra.mxu0 0
        %1176 = vmatprep.subr.bf16.mxu0 0
        %1177 = vmatpush1.bf16.msra.mxu0 0
        %1178 = vmatprep.subr.bf16.mxu0 0
        %1179 = vmatpush1.bf16.msra.mxu0 0
        %1180 = vmatprep.subr.bf16.mxu0 0
        %1181 = vmatpush1.bf16.msra.mxu0 0
        %1182 = vmatprep.mubr.bf16.mxu0 0
        %1183 = vmatmul.mubr.bf16.gmra.mrb[0].mxu0 %v1142
        %v1184 = vpop.f32.mrb[0].mxu0
        %v1185 = vadd.f32 0.0, %v1184
        %v1186 = vpop.f32.mrb[0].mxu0
        %v1187 = vadd.f32 0.0, %v1186
        %v1188 = vpop.f32.mrb[0].mxu0
        %v1189 = vpop.f32.mrb[0].mxu0
        %1190 = vdwg.mxu0
        %v1191 = vadd.f32 %v1120, %v1185
        %v1192 = vadd.f32 %v1122, %v1187
        %1193 = vrot.lane.b32.xlu0 %v992, 1
        %v1194 = vpop.permute.xlu0 %1193
        %1196 = vrot.lane.b32.xlu0 %v991, 1
        %v1197 = vpop.permute.xlu0 %1196
        %v1198 = vsel %vm516, %v1197, %v1194
        %v1201 = vsel %vm516, %v1194, %v1197
        %v1202 = vmul.f32 %v1201, %v527
        %v1203 = vmul.f32 %v1198, %v531
        %s1204 = scalar_lea.vmem %s3, 12
        %v1205 = vld [vmem:[%s1204] sm:$0xf]
        %v1206 = vpack.c.bf16 %v1202, %v1202
        %v1207 = vpack.c.bf16 %v1203, %v1203
        %v1209 = vsel %vm1024, %v1205, 0
        %v1212 = vsel %vm1028, %v1206, 0
        %v1215 = vsel %vm1028, %v1207, 0
        %1217 = vmatprep.subr.bf16.mxu0 %v1215
        %1218 = vmatpush1.bf16.msra.mxu0 %v1212
        %1219 = vmatprep.subr.bf16.mxu0 0
        %1220 = vmatpush1.bf16.msra.mxu0 0
        %1221 = vmatprep.subr.bf16.mxu0 0
        %1222 = vmatpush1.bf16.msra.mxu0 0
        %1223 = vmatprep.subr.bf16.mxu0 0
        %1224 = vmatpush1.bf16.msra.mxu0 0
        %1225 = vmatprep.subr.bf16.mxu0 0
        %1226 = vmatpush1.bf16.msra.mxu0 0
        %1227 = vmatprep.subr.bf16.mxu0 0
        %1228 = vmatpush1.bf16.msra.mxu0 0
        %1229 = vmatprep.subr.bf16.mxu0 0
        %1230 = vmatpush1.bf16.msra.mxu0 0
        %1231 = vmatprep.subr.bf16.mxu0 0
        %1232 = vmatpush1.bf16.msra.mxu0 0
        %1233 = vmatprep.subr.bf16.mxu0 0
        %1234 = vmatpush1.bf16.msra.mxu0 0
        %1235 = vmatprep.subr.bf16.mxu0 0
        %1236 = vmatpush1.bf16.msra.mxu0 0
        %1237 = vmatprep.subr.bf16.mxu0 0
        %1238 = vmatpush1.bf16.msra.mxu0 0
        %1239 = vmatprep.subr.bf16.mxu0 0
        %1240 = vmatpush1.bf16.msra.mxu0 0
        %1241 = vmatprep.subr.bf16.mxu0 0
        %1242 = vmatpush1.bf16.msra.mxu0 0
        %1243 = vmatprep.subr.bf16.mxu0 0
        %1244 = vmatpush1.bf16.msra.mxu0 0
        %1245 = vmatprep.subr.bf16.mxu0 0
        %1246 = vmatpush1.bf16.msra.mxu0 0
        %1247 = vmatprep.subr.bf16.mxu0 0
        %1248 = vmatpush1.bf16.msra.mxu0 0
        %1249 = vmatprep.mubr.bf16.mxu0 0
        %1250 = vmatmul.mubr.bf16.gmra.mrb[0].mxu0 %v1209
        %v1251 = vpop.f32.mrb[0].mxu0
        %v1252 = vadd.f32 0.0, %v1251
        %v1253 = vpop.f32.mrb[0].mxu0
        %v1254 = vadd.f32 0.0, %v1253
        %v1255 = vpop.f32.mrb[0].mxu0
        %v1256 = vpop.f32.mrb[0].mxu0
        %1257 = vdwg.mxu0
        %v1258 = vadd.f32 %v1191, %v1252
        %v1259 = vadd.f32 %v1192, %v1254
        %s1260 = scalar_lea.vmem %s3, 16
        %v1261 = vld [vmem:[%s1260] sm:$0xf]
        %v1262 = vpack.c.bf16 %v991, %v991
        %v1263 = vpack.c.bf16 %v992, %v992
        %v1265 = vsel %vm1024, %v1261, 0
        %v1268 = vsel %vm1028, %v1262, 0
        %v1271 = vsel %vm1028, %v1263, 0
        %1273 = vmatprep.subr.bf16.mxu0 %v1271
        %1274 = vmatpush1.bf16.msra.mxu0 %v1268
        %1275 = vmatprep.subr.bf16.mxu0 0
        %1276 = vmatpush1.bf16.msra.mxu0 0
        %1277 = vmatprep.subr.bf16.mxu0 0
        %1278 = vmatpush1.bf16.msra.mxu0 0
        %1279 = vmatprep.subr.bf16.mxu0 0
        %1280 = vmatpush1.bf16.msra.mxu0 0
        %1281 = vmatprep.subr.bf16.mxu0 0
        %1282 = vmatpush1.bf16.msra.mxu0 0
        %1283 = vmatprep.subr.bf16.mxu0 0
        %1284 = vmatpush1.bf16.msra.mxu0 0
        %1285 = vmatprep.subr.bf16.mxu0 0
        %1286 = vmatpush1.bf16.msra.mxu0 0
        %1287 = vmatprep.subr.bf16.mxu0 0
        %1288 = vmatpush1.bf16.msra.mxu0 0
        %1289 = vmatprep.subr.bf16.mxu0 0
        %1290 = vmatpush1.bf16.msra.mxu0 0
        %1291 = vmatprep.subr.bf16.mxu0 0
        %1292 = vmatpush1.bf16.msra.mxu0 0
        %1293 = vmatprep.subr.bf16.mxu0 0
        %1294 = vmatpush1.bf16.msra.mxu0 0
        %1295 = vmatprep.subr.bf16.mxu0 0
        %1296 = vmatpush1.bf16.msra.mxu0 0
        %1297 = vmatprep.subr.bf16.mxu0 0
        %1298 = vmatpush1.bf16.msra.mxu0 0
        %1299 = vmatprep.subr.bf16.mxu0 0
        %1300 = vmatpush1.bf16.msra.mxu0 0
        %1301 = vmatprep.subr.bf16.mxu0 0
        %1302 = vmatpush1.bf16.msra.mxu0 0
        %1303 = vmatprep.subr.bf16.mxu0 0
        %1304 = vmatpush1.bf16.msra.mxu0 0
        %1305 = vmatprep.mubr.bf16.mxu0 0
        %1306 = vmatmul.mubr.bf16.gmra.mrb[0].mxu0 %v1265
        %v1307 = vpop.f32.mrb[0].mxu0
        %v1308 = vadd.f32 0.0, %v1307
        %v1309 = vpop.f32.mrb[0].mxu0
        %v1310 = vadd.f32 0.0, %v1309
        %v1311 = vpop.f32.mrb[0].mxu0
        %v1312 = vpop.f32.mrb[0].mxu0
        %1313 = vdwg.mxu0
        %v1314 = vadd.f32 %v1258, %v1308
        %v1315 = vadd.f32 %v1259, %v1310
        %1316 = vrot.lane.b32.xlu0 %v991, 127
        %v1317 = vpop.permute.xlu0 %1316
        %1318 = vrot.lane.b32.xlu0 %v992, 127
        %v1319 = vpop.permute.xlu0 %1318
        %v1320 = vsel %vm653, %v1317, %v1319
        %v1324 = vsel %vm653, %v1319, %v1317
        %v1325 = vmul.f32 %v1320, %v665
        %v1326 = vmul.f32 %v1324, %v669
        %s1327 = scalar_lea.vmem %s3, 20
        %v1328 = vld [vmem:[%s1327] sm:$0xf]
        %v1329 = vpack.c.bf16 %v1325, %v1325
        %v1330 = vpack.c.bf16 %v1326, %v1326
        %v1332 = vsel %vm1024, %v1328, 0
        %v1335 = vsel %vm1028, %v1329, 0
        %v1338 = vsel %vm1028, %v1330, 0
        %1340 = vmatprep.subr.bf16.mxu0 %v1338
        %1341 = vmatpush1.bf16.msra.mxu0 %v1335
        %1342 = vmatprep.subr.bf16.mxu0 0
        %1343 = vmatpush1.bf16.msra.mxu0 0
        %1344 = vmatprep.subr.bf16.mxu0 0
        %1345 = vmatpush1.bf16.msra.mxu0 0
        %1346 = vmatprep.subr.bf16.mxu0 0
        %1347 = vmatpush1.bf16.msra.mxu0 0
        %1348 = vmatprep.subr.bf16.mxu0 0
        %1349 = vmatpush1.bf16.msra.mxu0 0
        %1350 = vmatprep.subr.bf16.mxu0 0
        %1351 = vmatpush1.bf16.msra.mxu0 0
        %1352 = vmatprep.subr.bf16.mxu0 0
        %1353 = vmatpush1.bf16.msra.mxu0 0
        %1354 = vmatprep.subr.bf16.mxu0 0
        %1355 = vmatpush1.bf16.msra.mxu0 0
        %1356 = vmatprep.subr.bf16.mxu0 0
        %1357 = vmatpush1.bf16.msra.mxu0 0
        %1358 = vmatprep.subr.bf16.mxu0 0
        %1359 = vmatpush1.bf16.msra.mxu0 0
        %1360 = vmatprep.subr.bf16.mxu0 0
        %1361 = vmatpush1.bf16.msra.mxu0 0
        %1362 = vmatprep.subr.bf16.mxu0 0
        %1363 = vmatpush1.bf16.msra.mxu0 0
        %1364 = vmatprep.subr.bf16.mxu0 0
        %1365 = vmatpush1.bf16.msra.mxu0 0
        %1366 = vmatprep.subr.bf16.mxu0 0
        %1367 = vmatpush1.bf16.msra.mxu0 0
        %1368 = vmatprep.subr.bf16.mxu0 0
        %1369 = vmatpush1.bf16.msra.mxu0 0
        %1370 = vmatprep.subr.bf16.mxu0 0
        %1371 = vmatpush1.bf16.msra.mxu0 0
        %1372 = vmatprep.mubr.bf16.mxu0 0
        %1373 = vmatmul.mubr.bf16.gmra.mrb[0].mxu0 %v1332
        %v1374 = vpop.f32.mrb[0].mxu0
        %v1375 = vadd.f32 0.0, %v1374
        %v1376 = vpop.f32.mrb[0].mxu0
        %v1377 = vadd.f32 0.0, %v1376
        %v1378 = vpop.f32.mrb[0].mxu0
        %v1379 = vpop.f32.mrb[0].mxu0
        %1380 = vdwg.mxu0
        %v1381 = vadd.f32 %v1314, %v1375
        %v1382 = vadd.f32 %v1315, %v1377
        %1383 = vrot.lane.b32.xlu0 %v991, 113
        %v1384 = vpop.permute.xlu0 %1383
        %1385 = vrot.lane.b32.xlu0 %v992, 113
        %v1386 = vpop.permute.xlu0 %1385
        %v1387 = vsel %vm734, %v1384, %v1386
        %v1391 = vsel %vm734, %v1386, %v1384
        %v1392 = vmul.f32 %v1387, %v746
        %v1393 = vmul.f32 %v1391, %v750
        %s1394 = scalar_lea.vmem %s3, 24
        %v1395 = vld [vmem:[%s1394] sm:$0xf]
        %v1396 = vpack.c.bf16 %v1392, %v1392
        %v1397 = vpack.c.bf16 %v1393, %v1393
        %v1399 = vsel %vm1024, %v1395, 0
        %v1402 = vsel %vm1028, %v1396, 0
        %v1405 = vsel %vm1028, %v1397, 0
        %1407 = vmatprep.subr.bf16.mxu0 %v1405
        %1408 = vmatpush1.bf16.msra.mxu0 %v1402
        %1409 = vmatprep.subr.bf16.mxu0 0
        %1410 = vmatpush1.bf16.msra.mxu0 0
        %1411 = vmatprep.subr.bf16.mxu0 0
        %1412 = vmatpush1.bf16.msra.mxu0 0
        %1413 = vmatprep.subr.bf16.mxu0 0
        %1414 = vmatpush1.bf16.msra.mxu0 0
        %1415 = vmatprep.subr.bf16.mxu0 0
        %1416 = vmatpush1.bf16.msra.mxu0 0
        %1417 = vmatprep.subr.bf16.mxu0 0
        %1418 = vmatpush1.bf16.msra.mxu0 0
        %1419 = vmatprep.subr.bf16.mxu0 0
        %1420 = vmatpush1.bf16.msra.mxu0 0
        %1421 = vmatprep.subr.bf16.mxu0 0
        %1422 = vmatpush1.bf16.msra.mxu0 0
        %1423 = vmatprep.subr.bf16.mxu0 0
        %1424 = vmatpush1.bf16.msra.mxu0 0
        %1425 = vmatprep.subr.bf16.mxu0 0
        %1426 = vmatpush1.bf16.msra.mxu0 0
        %1427 = vmatprep.subr.bf16.mxu0 0
        %1428 = vmatpush1.bf16.msra.mxu0 0
        %1429 = vmatprep.subr.bf16.mxu0 0
        %1430 = vmatpush1.bf16.msra.mxu0 0
        %1431 = vmatprep.subr.bf16.mxu0 0
        %1432 = vmatpush1.bf16.msra.mxu0 0
        %1433 = vmatprep.subr.bf16.mxu0 0
        %1434 = vmatpush1.bf16.msra.mxu0 0
        %1435 = vmatprep.subr.bf16.mxu0 0
        %1436 = vmatpush1.bf16.msra.mxu0 0
        %1437 = vmatprep.subr.bf16.mxu0 0
        %1438 = vmatpush1.bf16.msra.mxu0 0
        %1439 = vmatprep.mubr.bf16.mxu0 0
        %1440 = vmatmul.mubr.bf16.gmra.mrb[0].mxu0 %v1399
        %v1441 = vpop.f32.mrb[0].mxu0
        %v1442 = vadd.f32 0.0, %v1441
        %v1443 = vpop.f32.mrb[0].mxu0
        %v1444 = vadd.f32 0.0, %v1443
        %v1445 = vpop.f32.mrb[0].mxu0
        %v1446 = vpop.f32.mrb[0].mxu0
        %1447 = vdwg.mxu0
        %v1448 = vadd.f32 %v1381, %v1442
        %v1449 = vadd.f32 %v1382, %v1444
        %1450 = vrot.lane.b32.xlu0 %v991, 112
        %v1451 = vpop.permute.xlu0 %1450
        %1452 = vrot.lane.b32.xlu0 %v992, 112
        %v1453 = vpop.permute.xlu0 %1452
        %v1454 = vsel %vm815, %v1451, %v1453
        %v1458 = vsel %vm815, %v1453, %v1451
        %v1459 = vmul.f32 %v1454, %v827
        %v1460 = vmul.f32 %v1458, %v831
        %s1461 = scalar_lea.vmem %s3, 28
        %v1462 = vld [vmem:[%s1461] sm:$0xf]
        %v1463 = vpack.c.bf16 %v1459, %v1459
        %v1464 = vpack.c.bf16 %v1460, %v1460
        %v1466 = vsel %vm1024, %v1462, 0
        %v1469 = vsel %vm1028, %v1463, 0
        %v1472 = vsel %vm1028, %v1464, 0
        %1474 = vmatprep.subr.bf16.mxu0 %v1472
        %1475 = vmatpush1.bf16.msra.mxu0 %v1469
        %1476 = vmatprep.subr.bf16.mxu0 0
        %1477 = vmatpush1.bf16.msra.mxu0 0
        %1478 = vmatprep.subr.bf16.mxu0 0
        %1479 = vmatpush1.bf16.msra.mxu0 0
        %1480 = vmatprep.subr.bf16.mxu0 0
        %1481 = vmatpush1.bf16.msra.mxu0 0
        %1482 = vmatprep.subr.bf16.mxu0 0
        %1483 = vmatpush1.bf16.msra.mxu0 0
        %1484 = vmatprep.subr.bf16.mxu0 0
        %1485 = vmatpush1.bf16.msra.mxu0 0
        %1486 = vmatprep.subr.bf16.mxu0 0
        %1487 = vmatpush1.bf16.msra.mxu0 0
        %1488 = vmatprep.subr.bf16.mxu0 0
        %1489 = vmatpush1.bf16.msra.mxu0 0
        %1490 = vmatprep.subr.bf16.mxu0 0
        %1491 = vmatpush1.bf16.msra.mxu0 0
        %1492 = vmatprep.subr.bf16.mxu0 0
        %1493 = vmatpush1.bf16.msra.mxu0 0
        %1494 = vmatprep.subr.bf16.mxu0 0
        %1495 = vmatpush1.bf16.msra.mxu0 0
        %1496 = vmatprep.subr.bf16.mxu0 0
        %1497 = vmatpush1.bf16.msra.mxu0 0
        %1498 = vmatprep.subr.bf16.mxu0 0
        %1499 = vmatpush1.bf16.msra.mxu0 0
        %1500 = vmatprep.subr.bf16.mxu0 0
        %1501 = vmatpush1.bf16.msra.mxu0 0
        %1502 = vmatprep.subr.bf16.mxu0 0
        %1503 = vmatpush1.bf16.msra.mxu0 0
        %1504 = vmatprep.subr.bf16.mxu0 0
        %1505 = vmatpush1.bf16.msra.mxu0 0
        %1506 = vmatprep.mubr.bf16.mxu0 0
        %1507 = vmatmul.mubr.bf16.gmra.mrb[0].mxu0 %v1466
        %v1508 = vpop.f32.mrb[0].mxu0
        %v1509 = vadd.f32 0.0, %v1508
        %v1510 = vpop.f32.mrb[0].mxu0
        %v1511 = vadd.f32 0.0, %v1510
        %v1512 = vpop.f32.mrb[0].mxu0
        %v1513 = vpop.f32.mrb[0].mxu0
        %1514 = vdwg.mxu0
        %v1515 = vadd.f32 %v1448, %v1509
        %v1516 = vadd.f32 %v1449, %v1511
        %1517 = vrot.lane.b32.xlu0 %v991, 111
        %v1518 = vpop.permute.xlu0 %1517
        %1519 = vrot.lane.b32.xlu0 %v992, 111
        %v1520 = vpop.permute.xlu0 %1519
        %v1521 = vsel %vm896, %v1518, %v1520
        %v1525 = vsel %vm896, %v1520, %v1518
        %v1526 = vmul.f32 %v1521, %v908
        %v1527 = vmul.f32 %v1525, %v912
        %s1528 = scalar_lea.vmem %s3, 32
        %v1529 = vld [vmem:[%s1528] sm:$0xf]
        %v1530 = vpack.c.bf16 %v1526, %v1526
        %v1531 = vpack.c.bf16 %v1527, %v1527
        %v1533 = vsel %vm1024, %v1529, 0
        %v1536 = vsel %vm1028, %v1530, 0
        %v1539 = vsel %vm1028, %v1531, 0
        %1541 = vmatprep.subr.bf16.mxu0 %v1539
        %1542 = vmatpush1.bf16.msra.mxu0 %v1536
        %1543 = vmatprep.subr.bf16.mxu0 0
        %1544 = vmatpush1.bf16.msra.mxu0 0
        %1545 = vmatprep.subr.bf16.mxu0 0
        %1546 = vmatpush1.bf16.msra.mxu0 0
        %1547 = vmatprep.subr.bf16.mxu0 0
        %1548 = vmatpush1.bf16.msra.mxu0 0
        %1549 = vmatprep.subr.bf16.mxu0 0
        %1550 = vmatpush1.bf16.msra.mxu0 0
        %1551 = vmatprep.subr.bf16.mxu0 0
        %1552 = vmatpush1.bf16.msra.mxu0 0
        %1553 = vmatprep.subr.bf16.mxu0 0
        %1554 = vmatpush1.bf16.msra.mxu0 0
        %1555 = vmatprep.subr.bf16.mxu0 0
        %1556 = vmatpush1.bf16.msra.mxu0 0
        %1557 = vmatprep.subr.bf16.mxu0 0
        %1558 = vmatpush1.bf16.msra.mxu0 0
        %1559 = vmatprep.subr.bf16.mxu0 0
        %1560 = vmatpush1.bf16.msra.mxu0 0
        %1561 = vmatprep.subr.bf16.mxu0 0
        %1562 = vmatpush1.bf16.msra.mxu0 0
        %1563 = vmatprep.subr.bf16.mxu0 0
        %1564 = vmatpush1.bf16.msra.mxu0 0
        %1565 = vmatprep.subr.bf16.mxu0 0
        %1566 = vmatpush1.bf16.msra.mxu0 0
        %1567 = vmatprep.subr.bf16.mxu0 0
        %1568 = vmatpush1.bf16.msra.mxu0 0
        %1569 = vmatprep.subr.bf16.mxu0 0
        %1570 = vmatpush1.bf16.msra.mxu0 0
        %1571 = vmatprep.subr.bf16.mxu0 0
        %1572 = vmatpush1.bf16.msra.mxu0 0
        %1573 = vmatprep.mubr.bf16.mxu0 0
        %1574 = vmatmul.mubr.bf16.gmra.mrb[0].mxu0 %v1533
        %v1575 = vpop.f32.mrb[0].mxu0
        %v1576 = vadd.f32 0.0, %v1575
        %v1577 = vpop.f32.mrb[0].mxu0
        %v1578 = vadd.f32 0.0, %v1577
        %v1579 = vpop.f32.mrb[0].mxu0
        %v1580 = vpop.f32.mrb[0].mxu0
        %1581 = vdwg.mxu0
        %v1582 = vadd.f32 %v1515, %v1576
        %v1583 = vadd.f32 %v1516, %v1578
        %v1584 = vld [vmem:[%s4] sm:$0xff]
        %1586 = vset.pattern.permute.xlu0 0
        %1587 = vperm.xlu0 %1586, %v1584
        %v1588 = vpop.permute.xlu0 %1587
        %v1590 = vadd.f32 %v1582, %v1588
        %v1591 = vadd.f32 %v1583, %v1588
        %vm1592 = vcmp.gt.f32.partialorder %v1590, 0.0
        %vm1593 = vcmp.gt.f32.partialorder %v1591, 0.0
        %v1594 = vmin.f32 %v1590, 0.0
        %v1595 = vmin.f32 %v1591, 0.0
        %v1596 = vmul.f32 %v1594, 1.442695
        %v1597 = vpow.pop %v1596
        %v1598 = vmul.f32 %v1595, 1.442695
        %v1599 = vpow.pop %v1598
        %v1600 = vsub.f32 %v1597, 1.0
        %v1601 = vsub.f32 %v1599, 1.0
        %v1602 = vsel %vm1592, %v1590, %v1600
        %v1603 = vsel %vm1593, %v1591, %v1601
        %1604 = vst [vmem:[%s267] sm:$0xff] %v1602
        %1605 = vst [vmem:[%s267 + $0x8] sm:$0xff] %v1603
        %s1606 = sand.u32 %s162, 1
        %s1607 = scalar_lea.sflag [#allocation4], %s1606
        %s1608 = sand.u32 %s162, 1
        %s1609 = smul.addr %s1608, 16
        %s1610 = scalar_lea.vmem [#allocation5], %s1609
        // Predicated region
        $region49: #{tpu_custom_call.1} parent=43 // pred_check
          %p1611 = pneg %p172
        $region50: #{tpu_custom_call.1} parent=43 // pred_check_branch
          %1613 = sbr.rel (%p1611) target = $region52
        $region51: #{tpu_custom_call.1} parent=43 // pred_region
          %s1615 = ssub.s32 256, 256
          %1616 = vsyncadd %s1607, %s1615
          %s1617 = smul.addr %s23, 2
          %s1618 = smul.addr %s1617, 128
          %s1619 = scalar_lea.hbm %s6, %s1618
          %s1621 = sshll.u32 %s1610, 4
          %s1622 = int_to_ptr.vmem [resolvable:$true] %s1621
          %1624 = dma.vmem_to_hbm [thread:$0]  %s1622, 256, %s1619, %s1607
        $region52: #{tpu_custom_call.1} parent=43 // pred_fallthru
          _
      $region44: #{tpu_custom_call.1} parent=5 // pred_fallthru
        _
      %p1625 = scmp.le.s32.totalorder 2, %s18
      // Predicated region
      $region53: #{tpu_custom_call.1} parent=5 // pred_check
        %p1626 = pneg %p1625
      $region54: #{tpu_custom_call.1} parent=5 // pred_check_branch
        %1628 = sbr.rel (%p1626) target = $region56
      $region55: #{tpu_custom_call.1} parent=5 // pred_region
        %s1629 = ssub.s32 %s18, 2
        // Predicated region
        $region57: #{tpu_custom_call.1} parent=55 // pred_check
          %p1630 = pneg %p178
        $region58: #{tpu_custom_call.1} parent=55 // pred_check_branch
          %1632 = sbr.rel (%p1630) target = $region60
        $region59: #{tpu_custom_call.1} parent=55 // pred_region
          %s1633 = sand.u32 %s163, 1
          %s1634 = scalar_lea.sflag [#allocation4], %s1633
          %s1635 = sand.u32 %s163, 1
          %s1636 = smul.addr %s1635, 16
          %s1637 = scalar_lea.vmem [#allocation5], %s1636
          %1638 = dma.done %s1634, 256
        $region60: #{tpu_custom_call.1} parent=55 // pred_fallthru
          _
      $region56: #{tpu_custom_call.1} parent=5 // pred_fallthru
        _
    $region6: #{tpu_custom_call.1} parent=1 // loop_footer
      %s22 = sadd.s32 1, %s18
    $region7: #{tpu_custom_call.1} parent=1 // loop_footer_branch
      %17 = sbr.rel target = $region3
    $region8: #{tpu_custom_call.1} parent=1 // loop_exit
      _
    %1639 = vsyncpa [#allocation3], 1
    %s1640 = scalar_lea.sflag [#allocation3], 1
    %1641 = vsyncpa %s1640, 1
    %1642 = vsyncpa [#allocation4], 1
    %s1643 = scalar_lea.sflag [#allocation4], 1
    %1644 = vsyncpa %s1643, 1

</llo_original>
